<compile_context>
chip_gen: v7x
topology: tpu7x:2x2x1
jax: 0.10.0
libtpu: 0.0.40
codegen_flags: <defaults>
</compile_context>

<pallas_src>
import numpy as np
import jax
import jax.numpy as jnp
from jax import lax
from jax.experimental import pallas as pl
from jax.experimental.pallas import tpu as pltpu


def _make_predictor_kernel(M, B, C, H, W):
    """Fused kernel: per modality, sigmoid( 1x1( depthwise3x3(x) ) ) with folded weights.

    Ref order:
      x_0 ... x_{M-1} : (B, C, H*W) f32   flattened NCHW spatial (lane dim = H*W)
      w_eff           : (M, 9, C)   f32   folded depthwise*pointwise taps, tap = kh*3+kw
      b_eff           : (M,)        f32   folded scalar bias per modality (SMEM)
      o_0 ... o_{M-1} : (B, H*W)    f32
    """
    HW = H * W

    def kernel(*refs):
        x_refs = refs[:M]
        w_ref = refs[M]
        b_ref = refs[M + 1]
        o_refs = refs[M + 2:]

        # Edge masks for the 1-px zero-padding halo, computed once on the flat lane axis
        # and reused across all modalities / batches / taps (in-kernel halo handling, so
        # the wrapper never pads the activations).
        g = lax.broadcasted_iota(jnp.int32, (1, HW), 1)
        col = g % W
        left_ok = (col > 0).astype(jnp.float32)          # tap kw = 0 is in-bounds
        right_ok = (col < W - 1).astype(jnp.float32)     # tap kw = 2 is in-bounds
        top_ok = (g >= W).astype(jnp.float32)            # tap kh = 0 is in-bounds
        bot_ok = (g < (H - 1) * W).astype(jnp.float32)   # tap kh = 2 is in-bounds
        row_mask = [top_ok, None, bot_ok]
        col_mask = [left_ok, None, right_ok]

        for m in range(M):                                # static unroll over modalities
            w_m = w_ref[m]                                # (9, C), loaded once per modality
            bias = b_ref[m]                               # SMEM scalar
            rows = []
            for b in range(B):                            # small static batch loop
                xb = x_refs[m][b]                         # (C, HW)
                # Single MXU contraction over channels: all 9 tap partial sums at once.
                p = jnp.dot(w_m, xb, preferred_element_type=jnp.float32)   # (9, HW)
                acc = p[4:5, :]                           # centre tap (kh=1, kw=1): no shift
                for kh in range(3):
                    for kw in range(3):
                        if kh == 1 and kw == 1:
                            continue
                        t = kh * 3 + kw
                        # out[g] needs p[t][g + (kh-1)*W + (kw-1)]  -> lane roll on a (1,HW) row
                        shift = ((1 - kh) * W + (1 - kw)) % HW
                        contrib = pltpu.roll(p[t:t + 1, :], shift, 1)
                        # Zero the contributions whose source lies in the (virtual) halo;
                        # this also neutralises any roll wrap-around.
                        if row_mask[kh] is not None:
                            contrib = contrib * row_mask[kh]
                        if col_mask[kw] is not None:
                            contrib = contrib * col_mask[kw]
                        acc = acc + contrib
                rows.append(acc)
            y = jnp.concatenate(rows, axis=0)             # (B, HW)
            # One dense, lane-multiple-of-128 store per modality.
            o_refs[m][...] = jax.nn.sigmoid(y + bias).astype(o_refs[m].dtype)

    return kernel


def predictor_conv(x_list, dw_w, dw_b, pw_w, pw_b):
    """
    x_list: list of M arrays, each (B, C, H, W)  (NCHW like PyTorch)
    dw_w: (M, C, 3, 3)   depthwise conv weights   (torch: (C, 1, 3, 3) per modality)
    dw_b: (M, C)         depthwise conv bias
    pw_w: (M, C)         1x1 conv weights          (torch: (1, C, 1, 1) per modality)
    pw_b: (M,)           1x1 conv bias
    returns: list of M arrays, each (B, 1, H, W)
    """
    M = len(x_list)
    B, C, H, W = x_list[0].shape
    HW = H * W

    # Fold the 1x1 conv + both biases into the depthwise taps (all linear before sigmoid):
    #   w_eff[m, kh*3+kw, c] = dw_w[m, c, kh, kw] * pw_w[m, c]
    #   b_eff[m]             = sum_c dw_b[m, c] * pw_w[m, c] + pw_b[m]
    w_eff = (dw_w * pw_w[:, :, None, None]).transpose(0, 2, 3, 1).reshape(M, 9, C)
    w_eff = w_eff.astype(jnp.float32)
    b_eff = (jnp.sum(dw_b * pw_w, axis=1) + pw_b).astype(jnp.float32)

    # No stack / pad passes over the activations: native NCHW, free H*W flatten.
    xs = [x.reshape(B, C, HW) for x in x_list]

    kernel = _make_predictor_kernel(M, B, C, H, W)

    out_shape = tuple(jax.ShapeDtypeStruct((B, HW), x_list[i].dtype) for i in range(M))
    in_specs = (
        [pl.BlockSpec(memory_space=pltpu.MemorySpace.VMEM) for _ in range(M)]   # x_m
        + [pl.BlockSpec(memory_space=pltpu.MemorySpace.VMEM),                   # w_eff
           pl.BlockSpec(memory_space=pltpu.MemorySpace.SMEM)]                   # b_eff
    )
    out_specs = tuple(pl.BlockSpec(memory_space=pltpu.MemorySpace.VMEM) for _ in range(M))

    outs = pl.pallas_call(
        kernel,
        out_shape=out_shape,
        in_specs=in_specs,
        out_specs=out_specs,
    )(*xs, w_eff, b_eff)

    # (B, H*W) -> (B, 1, H, W), matching the PyTorch module output.
    return [o.reshape(B, 1, H, W) for o in outs]


def _reference(x_list, dw_w, dw_b, pw_w, pw_b):
    """Plain JAX/XLA reference mirroring the PyTorch module exactly (NCHW)."""
    outs = []
    for i in range(len(x_list)):
        C = x_list[i].shape[1]
        y = lax.conv_general_dilated(
            x_list[i], dw_w[i][:, None, :, :],             # (C, 1, 3, 3)
            window_strides=(1, 1), padding=((1, 1), (1, 1)),
            dimension_numbers=("NCHW", "OIHW", "NCHW"),
            feature_group_count=C)
        y = y + dw_b[i][None, :, None, None]
        z = lax.conv_general_dilated(
            y, pw_w[i][None, :, None, None],               # (1, C, 1, 1)
            window_strides=(1, 1), padding="VALID",
            dimension_numbers=("NCHW", "OIHW", "NCHW"))
        z = z + pw_b[i]
        outs.append(jax.nn.sigmoid(z))
    return outs


if __name__ == "__main__":
    # small shapes consistent with PredictorConv(embed_dim=C, num_modals=M)
    M, B, C, H, W = 4, 2, 32, 16, 16

    key = jax.random.PRNGKey(0)
    kx, kdw, kdb, kpw, kpb = jax.random.split(key, 5)

    x_list = [jax.random.normal(k, (B, C, H, W), jnp.float32)
              for k in jax.random.split(kx, M)]

    # deterministic synthetic parameters (module __init__ only defines shapes)
    dw_w = 0.1 * jax.random.normal(kdw, (M, C, 3, 3), jnp.float32)
    dw_b = 0.1 * jax.random.normal(kdb, (M, C), jnp.float32)
    pw_w = 0.1 * jax.random.normal(kpw, (M, C), jnp.float32)
    pw_b = 0.1 * jax.random.normal(kpb, (M,), jnp.float32)

    out = predictor_conv(x_list, dw_w, dw_b, pw_w, pw_b)
    out = [jax.block_until_ready(o) for o in out]

    ref = _reference(x_list, dw_w, dw_b, pw_w, pw_b)
    for o, r in zip(out, ref):
        assert o.shape == (B, 1, H, W)
        np.testing.assert_allclose(np.asarray(o), np.asarray(r),
                                   rtol=2e-3, atol=5e-4)

    print("KERNEL_OK")
</pallas_src>

<mosaic_0001>
module attributes {stable_mosaic.version = 11 : i64} {
  func.func @kernel(%arg0: memref<2x32x256xf32, #tpu.memory_space<vmem>>, %arg1: memref<2x32x256xf32, #tpu.memory_space<vmem>>, %arg2: memref<2x32x256xf32, #tpu.memory_space<vmem>>, %arg3: memref<2x32x256xf32, #tpu.memory_space<vmem>>, %arg4: memref<4x9x32xf32, #tpu.memory_space<vmem>>, %arg5: memref<4xf32, #tpu.memory_space<smem>>, %arg6: memref<2x256xf32, #tpu.memory_space<vmem>>, %arg7: memref<2x256xf32, #tpu.memory_space<vmem>>, %arg8: memref<2x256xf32, #tpu.memory_space<vmem>>, %arg9: memref<2x256xf32, #tpu.memory_space<vmem>>) attributes {dimension_semantics = [], scalar_prefetch = 0 : i64, scratch_operands = 0 : i64, tpu.core_type = #tpu.core_type<tc>} {
    %0 = tpu.iota {dimensions = array<i32: 1>} : vector<1x256xi32>
    %c16_i32 = arith.constant 16 : i32
    %c0_i32 = arith.constant 0 : i32
    %1 = arith.cmpi eq, %c16_i32, %c0_i32 : i32
    %c1_i32 = arith.constant 1 : i32
    %2 = arith.select %1, %c1_i32, %c16_i32 : i32
    %3 = vector.broadcast %2 : i32 to vector<1x256xi32>
    %4 = arith.remsi %0, %3 : vector<1x256xi32>
    %c0_i32_0 = arith.constant 0 : i32
    %5 = vector.broadcast %c0_i32_0 : i32 to vector<1x256xi32>
    %6 = arith.cmpi ne, %4, %5 : vector<1x256xi32>
    %c0_i32_1 = arith.constant 0 : i32
    %7 = vector.broadcast %c0_i32_1 : i32 to vector<1x256xi32>
    %8 = arith.cmpi slt, %4, %7 : vector<1x256xi32>
    %c0_i32_2 = arith.constant 0 : i32
    %9 = arith.cmpi slt, %2, %c0_i32_2 : i32
    %10 = vector.broadcast %9 : i1 to vector<1x256xi1>
    %11 = vector.broadcast %10 : vector<1x256xi1> to vector<1x256xi1>
    %12 = arith.xori %8, %11 : vector<1x256xi1>
    %13 = arith.andi %12, %6 : vector<1x256xi1>
    %14 = vector.broadcast %2 : i32 to vector<1x256xi32>
    %15 = arith.addi %4, %14 : vector<1x256xi32>
    %16 = arith.select %13, %15, %4 : vector<1x256xi1>, vector<1x256xi32>
    %c0_i32_3 = arith.constant 0 : i32
    %17 = vector.broadcast %c0_i32_3 : i32 to vector<1x256xi32>
    %18 = arith.cmpi sgt, %16, %17 : vector<1x256xi32>
    %19 = arith.extui %18 : vector<1x256xi1> to vector<1x256xi32>
    %20 = arith.sitofp %19 : vector<1x256xi32> to vector<1x256xf32>
    %c15_i32 = arith.constant 15 : i32
    %21 = vector.broadcast %c15_i32 : i32 to vector<1x256xi32>
    %22 = arith.cmpi slt, %16, %21 : vector<1x256xi32>
    %23 = arith.extui %22 : vector<1x256xi1> to vector<1x256xi32>
    %24 = arith.sitofp %23 : vector<1x256xi32> to vector<1x256xf32>
    %c16_i32_4 = arith.constant 16 : i32
    %25 = vector.broadcast %c16_i32_4 : i32 to vector<1x256xi32>
    %26 = arith.cmpi sge, %0, %25 : vector<1x256xi32>
    %27 = arith.extui %26 : vector<1x256xi1> to vector<1x256xi32>
    %28 = arith.sitofp %27 : vector<1x256xi32> to vector<1x256xf32>
    %c240_i32 = arith.constant 240 : i32
    %29 = vector.broadcast %c240_i32 : i32 to vector<1x256xi32>
    %30 = arith.cmpi slt, %0, %29 : vector<1x256xi32>
    %31 = arith.extui %30 : vector<1x256xi1> to vector<1x256xi32>
    %32 = arith.sitofp %31 : vector<1x256xi32> to vector<1x256xf32>
    %c0 = arith.constant 0 : index
    %c0_5 = arith.constant 0 : index
    %c0_6 = arith.constant 0 : index
    %33 = vector.load %arg4[%c0, %c0_5, %c0_6] : memref<4x9x32xf32, #tpu.memory_space<vmem>>, vector<1x9x32xf32>
    %34 = vector.shape_cast %33 : vector<1x9x32xf32> to vector<9x32xf32>
    %c0_7 = arith.constant 0 : index
    %35 = memref.load %arg5[%c0_7] : memref<4xf32, #tpu.memory_space<smem>>
    %c0_8 = arith.constant 0 : index
    %c0_9 = arith.constant 0 : index
    %c0_10 = arith.constant 0 : index
    %36 = vector.load %arg0[%c0_8, %c0_9, %c0_10] : memref<2x32x256xf32, #tpu.memory_space<vmem>>, vector<1x32x256xf32>
    %37 = vector.shape_cast %36 : vector<1x32x256xf32> to vector<32x256xf32>
    %cst = arith.constant dense<0.000000e+00> : vector<9x256xf32>
    %38 = tpu.matmul %34, %37, %cst {dimension_numbers = #tpu.dot_dimension_numbers<[1], [0], [0], [1], [0, 0, 1, 1], [], []>} : vector<9x32xf32>, vector<32x256xf32>, vector<9x256xf32> -> vector<9x256xf32>
    %39 = vector.extract_strided_slice %38 {offsets = [4, 0], sizes = [1, 256], strides = [1, 1]} : vector<9x256xf32> to vector<1x256xf32>
    %40 = vector.extract_strided_slice %38 {offsets = [0, 0], sizes = [1, 256], strides = [1, 1]} : vector<9x256xf32> to vector<1x256xf32>
    %c17_i32 = arith.constant 17 : i32
    %41 = tpu.dynamic_rotate %40 by %c17_i32 dim 1 : vector<1x256xf32>, i32 -> vector<1x256xf32>
    %42 = arith.mulf %41, %28 : vector<1x256xf32>
    %43 = arith.mulf %42, %20 : vector<1x256xf32>
    %44 = arith.addf %39, %43 : vector<1x256xf32>
    %45 = vector.extract_strided_slice %38 {offsets = [1, 0], sizes = [1, 256], strides = [1, 1]} : vector<9x256xf32> to vector<1x256xf32>
    %c16_i32_11 = arith.constant 16 : i32
    %46 = tpu.dynamic_rotate %45 by %c16_i32_11 dim 1 : vector<1x256xf32>, i32 -> vector<1x256xf32>
    %47 = arith.mulf %46, %28 : vector<1x256xf32>
    %48 = arith.addf %44, %47 : vector<1x256xf32>
    %49 = vector.extract_strided_slice %38 {offsets = [2, 0], sizes = [1, 256], strides = [1, 1]} : vector<9x256xf32> to vector<1x256xf32>
    %c15_i32_12 = arith.constant 15 : i32
    %50 = tpu.dynamic_rotate %49 by %c15_i32_12 dim 1 : vector<1x256xf32>, i32 -> vector<1x256xf32>
    %51 = arith.mulf %50, %28 : vector<1x256xf32>
    %52 = arith.mulf %51, %24 : vector<1x256xf32>
    %53 = arith.addf %48, %52 : vector<1x256xf32>
    %54 = vector.extract_strided_slice %38 {offsets = [3, 0], sizes = [1, 256], strides = [1, 1]} : vector<9x256xf32> to vector<1x256xf32>
    %c1_i32_13 = arith.constant 1 : i32
    %55 = tpu.dynamic_rotate %54 by %c1_i32_13 dim 1 : vector<1x256xf32>, i32 -> vector<1x256xf32>
    %56 = arith.mulf %55, %20 : vector<1x256xf32>
    %57 = arith.addf %53, %56 : vector<1x256xf32>
    %58 = vector.extract_strided_slice %38 {offsets = [5, 0], sizes = [1, 256], strides = [1, 1]} : vector<9x256xf32> to vector<1x256xf32>
    %c255_i32 = arith.constant 255 : i32
    %59 = tpu.dynamic_rotate %58 by %c255_i32 dim 1 : vector<1x256xf32>, i32 -> vector<1x256xf32>
    %60 = arith.mulf %59, %24 : vector<1x256xf32>
    %61 = arith.addf %57, %60 : vector<1x256xf32>
    %62 = vector.extract_strided_slice %38 {offsets = [6, 0], sizes = [1, 256], strides = [1, 1]} : vector<9x256xf32> to vector<1x256xf32>
    %c241_i32 = arith.constant 241 : i32
    %63 = tpu.dynamic_rotate %62 by %c241_i32 dim 1 : vector<1x256xf32>, i32 -> vector<1x256xf32>
    %64 = arith.mulf %63, %32 : vector<1x256xf32>
    %65 = arith.mulf %64, %20 : vector<1x256xf32>
    %66 = arith.addf %61, %65 : vector<1x256xf32>
    %67 = vector.extract_strided_slice %38 {offsets = [7, 0], sizes = [1, 256], strides = [1, 1]} : vector<9x256xf32> to vector<1x256xf32>
    %c240_i32_14 = arith.constant 240 : i32
    %68 = tpu.dynamic_rotate %67 by %c240_i32_14 dim 1 : vector<1x256xf32>, i32 -> vector<1x256xf32>
    %69 = arith.mulf %68, %32 : vector<1x256xf32>
    %70 = arith.addf %66, %69 : vector<1x256xf32>
    %71 = vector.extract_strided_slice %38 {offsets = [8, 0], sizes = [1, 256], strides = [1, 1]} : vector<9x256xf32> to vector<1x256xf32>
    %c239_i32 = arith.constant 239 : i32
    %72 = tpu.dynamic_rotate %71 by %c239_i32 dim 1 : vector<1x256xf32>, i32 -> vector<1x256xf32>
    %73 = arith.mulf %72, %32 : vector<1x256xf32>
    %74 = arith.mulf %73, %24 : vector<1x256xf32>
    %75 = arith.addf %70, %74 : vector<1x256xf32>
    %c1 = arith.constant 1 : index
    %c0_15 = arith.constant 0 : index
    %c0_16 = arith.constant 0 : index
    %76 = vector.load %arg0[%c1, %c0_15, %c0_16] : memref<2x32x256xf32, #tpu.memory_space<vmem>>, vector<1x32x256xf32>
    %77 = vector.shape_cast %76 : vector<1x32x256xf32> to vector<32x256xf32>
    %cst_17 = arith.constant dense<0.000000e+00> : vector<9x256xf32>
    %78 = tpu.matmul %34, %77, %cst_17 {dimension_numbers = #tpu.dot_dimension_numbers<[1], [0], [0], [1], [0, 0, 1, 1], [], []>} : vector<9x32xf32>, vector<32x256xf32>, vector<9x256xf32> -> vector<9x256xf32>
    %79 = vector.extract_strided_slice %78 {offsets = [4, 0], sizes = [1, 256], strides = [1, 1]} : vector<9x256xf32> to vector<1x256xf32>
    %80 = vector.extract_strided_slice %78 {offsets = [0, 0], sizes = [1, 256], strides = [1, 1]} : vector<9x256xf32> to vector<1x256xf32>
    %c17_i32_18 = arith.constant 17 : i32
    %81 = tpu.dynamic_rotate %80 by %c17_i32_18 dim 1 : vector<1x256xf32>, i32 -> vector<1x256xf32>
    %82 = arith.mulf %81, %28 : vector<1x256xf32>
    %83 = arith.mulf %82, %20 : vector<1x256xf32>
    %84 = arith.addf %79, %83 : vector<1x256xf32>
    %85 = vector.extract_strided_slice %78 {offsets = [1, 0], sizes = [1, 256], strides = [1, 1]} : vector<9x256xf32> to vector<1x256xf32>
    %c16_i32_19 = arith.constant 16 : i32
    %86 = tpu.dynamic_rotate %85 by %c16_i32_19 dim 1 : vector<1x256xf32>, i32 -> vector<1x256xf32>
    %87 = arith.mulf %86, %28 : vector<1x256xf32>
    %88 = arith.addf %84, %87 : vector<1x256xf32>
    %89 = vector.extract_strided_slice %78 {offsets = [2, 0], sizes = [1, 256], strides = [1, 1]} : vector<9x256xf32> to vector<1x256xf32>
    %c15_i32_20 = arith.constant 15 : i32
    %90 = tpu.dynamic_rotate %89 by %c15_i32_20 dim 1 : vector<1x256xf32>, i32 -> vector<1x256xf32>
    %91 = arith.mulf %90, %28 : vector<1x256xf32>
    %92 = arith.mulf %91, %24 : vector<1x256xf32>
    %93 = arith.addf %88, %92 : vector<1x256xf32>
    %94 = vector.extract_strided_slice %78 {offsets = [3, 0], sizes = [1, 256], strides = [1, 1]} : vector<9x256xf32> to vector<1x256xf32>
    %c1_i32_21 = arith.constant 1 : i32
    %95 = tpu.dynamic_rotate %94 by %c1_i32_21 dim 1 : vector<1x256xf32>, i32 -> vector<1x256xf32>
    %96 = arith.mulf %95, %20 : vector<1x256xf32>
    %97 = arith.addf %93, %96 : vector<1x256xf32>
    %98 = vector.extract_strided_slice %78 {offsets = [5, 0], sizes = [1, 256], strides = [1, 1]} : vector<9x256xf32> to vector<1x256xf32>
    %c255_i32_22 = arith.constant 255 : i32
    %99 = tpu.dynamic_rotate %98 by %c255_i32_22 dim 1 : vector<1x256xf32>, i32 -> vector<1x256xf32>
    %100 = arith.mulf %99, %24 : vector<1x256xf32>
    %101 = arith.addf %97, %100 : vector<1x256xf32>
    %102 = vector.extract_strided_slice %78 {offsets = [6, 0], sizes = [1, 256], strides = [1, 1]} : vector<9x256xf32> to vector<1x256xf32>
    %c241_i32_23 = arith.constant 241 : i32
    %103 = tpu.dynamic_rotate %102 by %c241_i32_23 dim 1 : vector<1x256xf32>, i32 -> vector<1x256xf32>
    %104 = arith.mulf %103, %32 : vector<1x256xf32>
    %105 = arith.mulf %104, %20 : vector<1x256xf32>
    %106 = arith.addf %101, %105 : vector<1x256xf32>
    %107 = vector.extract_strided_slice %78 {offsets = [7, 0], sizes = [1, 256], strides = [1, 1]} : vector<9x256xf32> to vector<1x256xf32>
    %c240_i32_24 = arith.constant 240 : i32
    %108 = tpu.dynamic_rotate %107 by %c240_i32_24 dim 1 : vector<1x256xf32>, i32 -> vector<1x256xf32>
    %109 = arith.mulf %108, %32 : vector<1x256xf32>
    %110 = arith.addf %106, %109 : vector<1x256xf32>
    %111 = vector.extract_strided_slice %78 {offsets = [8, 0], sizes = [1, 256], strides = [1, 1]} : vector<9x256xf32> to vector<1x256xf32>
    %c239_i32_25 = arith.constant 239 : i32
    %112 = tpu.dynamic_rotate %111 by %c239_i32_25 dim 1 : vector<1x256xf32>, i32 -> vector<1x256xf32>
    %113 = arith.mulf %112, %32 : vector<1x256xf32>
    %114 = arith.mulf %113, %24 : vector<1x256xf32>
    %115 = arith.addf %110, %114 : vector<1x256xf32>
    %116 = tpu.concatenate %75, %115 in 0 : vector<1x256xf32>, vector<1x256xf32> -> vector<2x256xf32>
    %117 = vector.broadcast %35 : f32 to vector<2x256xf32>
    %118 = arith.addf %116, %117 : vector<2x256xf32>
    %119 = arith.negf %118 : vector<2x256xf32>
    %120 = math.exp %119 : vector<2x256xf32>
    %cst_26 = arith.constant 1.000000e+00 : f32
    %121 = vector.broadcast %cst_26 : f32 to vector<2x256xf32>
    %122 = arith.addf %121, %120 : vector<2x256xf32>
    %123 = arith.divf %121, %122 : vector<2x256xf32>
    %c0_27 = arith.constant 0 : index
    %c0_28 = arith.constant 0 : index
    %124 = vector.load %arg6[%c0_27, %c0_28] : memref<2x256xf32, #tpu.memory_space<vmem>>, vector<2x256xf32>
    tpu.vector_store %arg6[%c0_27, %c0_28], %123 {strides = array<i32>} : memref<2x256xf32, #tpu.memory_space<vmem>>, vector<2x256xf32>,
    %c1_29 = arith.constant 1 : index
    %c0_30 = arith.constant 0 : index
    %c0_31 = arith.constant 0 : index
    %125 = vector.load %arg4[%c1_29, %c0_30, %c0_31] : memref<4x9x32xf32, #tpu.memory_space<vmem>>, vector<1x9x32xf32>
    %126 = vector.shape_cast %125 : vector<1x9x32xf32> to vector<9x32xf32>
    %c1_32 = arith.constant 1 : index
    %127 = memref.load %arg5[%c1_32] : memref<4xf32, #tpu.memory_space<smem>>
    %c0_33 = arith.constant 0 : index
    %c0_34 = arith.constant 0 : index
    %c0_35 = arith.constant 0 : index
    %128 = vector.load %arg1[%c0_33, %c0_34, %c0_35] : memref<2x32x256xf32, #tpu.memory_space<vmem>>, vector<1x32x256xf32>
    %129 = vector.shape_cast %128 : vector<1x32x256xf32> to vector<32x256xf32>
    %cst_36 = arith.constant dense<0.000000e+00> : vector<9x256xf32>
    %130 = tpu.matmul %126, %129, %cst_36 {dimension_numbers = #tpu.dot_dimension_numbers<[1], [0], [0], [1], [0, 0, 1, 1], [], []>} : vector<9x32xf32>, vector<32x256xf32>, vector<9x256xf32> -> vector<9x256xf32>
    %131 = vector.extract_strided_slice %130 {offsets = [4, 0], sizes = [1, 256], strides = [1, 1]} : vector<9x256xf32> to vector<1x256xf32>
    %132 = vector.extract_strided_slice %130 {offsets = [0, 0], sizes = [1, 256], strides = [1, 1]} : vector<9x256xf32> to vector<1x256xf32>
    %c17_i32_37 = arith.constant 17 : i32
    %133 = tpu.dynamic_rotate %132 by %c17_i32_37 dim 1 : vector<1x256xf32>, i32 -> vector<1x256xf32>
    %134 = arith.mulf %133, %28 : vector<1x256xf32>
    %135 = arith.mulf %134, %20 : vector<1x256xf32>
    %136 = arith.addf %131, %135 : vector<1x256xf32>
    %137 = vector.extract_strided_slice %130 {offsets = [1, 0], sizes = [1, 256], strides = [1, 1]} : vector<9x256xf32> to vector<1x256xf32>
    %c16_i32_38 = arith.constant 16 : i32
    %138 = tpu.dynamic_rotate %137 by %c16_i32_38 dim 1 : vector<1x256xf32>, i32 -> vector<1x256xf32>
    %139 = arith.mulf %138, %28 : vector<1x256xf32>
    %140 = arith.addf %136, %139 : vector<1x256xf32>
    %141 = vector.extract_strided_slice %130 {offsets = [2, 0], sizes = [1, 256], strides = [1, 1]} : vector<9x256xf32> to vector<1x256xf32>
    %c15_i32_39 = arith.constant 15 : i32
    %142 = tpu.dynamic_rotate %141 by %c15_i32_39 dim 1 : vector<1x256xf32>, i32 -> vector<1x256xf32>
    %143 = arith.mulf %142, %28 : vector<1x256xf32>
    %144 = arith.mulf %143, %24 : vector<1x256xf32>
    %145 = arith.addf %140, %144 : vector<1x256xf32>
    %146 = vector.extract_strided_slice %130 {offsets = [3, 0], sizes = [1, 256], strides = [1, 1]} : vector<9x256xf32> to vector<1x256xf32>
    %c1_i32_40 = arith.constant 1 : i32
    %147 = tpu.dynamic_rotate %146 by %c1_i32_40 dim 1 : vector<1x256xf32>, i32 -> vector<1x256xf32>
    %148 = arith.mulf %147, %20 : vector<1x256xf32>
    %149 = arith.addf %145, %148 : vector<1x256xf32>
    %150 = vector.extract_strided_slice %130 {offsets = [5, 0], sizes = [1, 256], strides = [1, 1]} : vector<9x256xf32> to vector<1x256xf32>
    %c255_i32_41 = arith.constant 255 : i32
    %151 = tpu.dynamic_rotate %150 by %c255_i32_41 dim 1 : vector<1x256xf32>, i32 -> vector<1x256xf32>
    %152 = arith.mulf %151, %24 : vector<1x256xf32>
    %153 = arith.addf %149, %152 : vector<1x256xf32>
    %154 = vector.extract_strided_slice %130 {offsets = [6, 0], sizes = [1, 256], strides = [1, 1]} : vector<9x256xf32> to vector<1x256xf32>
    %c241_i32_42 = arith.constant 241 : i32
    %155 = tpu.dynamic_rotate %154 by %c241_i32_42 dim 1 : vector<1x256xf32>, i32 -> vector<1x256xf32>
    %156 = arith.mulf %155, %32 : vector<1x256xf32>
    %157 = arith.mulf %156, %20 : vector<1x256xf32>
    %158 = arith.addf %153, %157 : vector<1x256xf32>
    %159 = vector.extract_strided_slice %130 {offsets = [7, 0], sizes = [1, 256], strides = [1, 1]} : vector<9x256xf32> to vector<1x256xf32>
    %c240_i32_43 = arith.constant 240 : i32
    %160 = tpu.dynamic_rotate %159 by %c240_i32_43 dim 1 : vector<1x256xf32>, i32 -> vector<1x256xf32>
    %161 = arith.mulf %160, %32 : vector<1x256xf32>
    %162 = arith.addf %158, %161 : vector<1x256xf32>
    %163 = vector.extract_strided_slice %130 {offsets = [8, 0], sizes = [1, 256], strides = [1, 1]} : vector<9x256xf32> to vector<1x256xf32>
    %c239_i32_44 = arith.constant 239 : i32
    %164 = tpu.dynamic_rotate %163 by %c239_i32_44 dim 1 : vector<1x256xf32>, i32 -> vector<1x256xf32>
    %165 = arith.mulf %164, %32 : vector<1x256xf32>
    %166 = arith.mulf %165, %24 : vector<1x256xf32>
    %167 = arith.addf %162, %166 : vector<1x256xf32>
    %c1_45 = arith.constant 1 : index
    %c0_46 = arith.constant 0 : index
    %c0_47 = arith.constant 0 : index
    %168 = vector.load %arg1[%c1_45, %c0_46, %c0_47] : memref<2x32x256xf32, #tpu.memory_space<vmem>>, vector<1x32x256xf32>
    %169 = vector.shape_cast %168 : vector<1x32x256xf32> to vector<32x256xf32>
    %cst_48 = arith.constant dense<0.000000e+00> : vector<9x256xf32>
    %170 = tpu.matmul %126, %169, %cst_48 {dimension_numbers = #tpu.dot_dimension_numbers<[1], [0], [0], [1], [0, 0, 1, 1], [], []>} : vector<9x32xf32>, vector<32x256xf32>, vector<9x256xf32> -> vector<9x256xf32>
    %171 = vector.extract_strided_slice %170 {offsets = [4, 0], sizes = [1, 256], strides = [1, 1]} : vector<9x256xf32> to vector<1x256xf32>
    %172 = vector.extract_strided_slice %170 {offsets = [0, 0], sizes = [1, 256], strides = [1, 1]} : vector<9x256xf32> to vector<1x256xf32>
    %c17_i32_49 = arith.constant 17 : i32
    %173 = tpu.dynamic_rotate %172 by %c17_i32_49 dim 1 : vector<1x256xf32>, i32 -> vector<1x256xf32>
    %174 = arith.mulf %173, %28 : vector<1x256xf32>
    %175 = arith.mulf %174, %20 : vector<1x256xf32>
    %176 = arith.addf %171, %175 : vector<1x256xf32>
    %177 = vector.extract_strided_slice %170 {offsets = [1, 0], sizes = [1, 256], strides = [1, 1]} : vector<9x256xf32> to vector<1x256xf32>
    %c16_i32_50 = arith.constant 16 : i32
    %178 = tpu.dynamic_rotate %177 by %c16_i32_50 dim 1 : vector<1x256xf32>, i32 -> vector<1x256xf32>
    %179 = arith.mulf %178, %28 : vector<1x256xf32>
    %180 = arith.addf %176, %179 : vector<1x256xf32>
    %181 = vector.extract_strided_slice %170 {offsets = [2, 0], sizes = [1, 256], strides = [1, 1]} : vector<9x256xf32> to vector<1x256xf32>
    %c15_i32_51 = arith.constant 15 : i32
    %182 = tpu.dynamic_rotate %181 by %c15_i32_51 dim 1 : vector<1x256xf32>, i32 -> vector<1x256xf32>
    %183 = arith.mulf %182, %28 : vector<1x256xf32>
    %184 = arith.mulf %183, %24 : vector<1x256xf32>
    %185 = arith.addf %180, %184 : vector<1x256xf32>
    %186 = vector.extract_strided_slice %170 {offsets = [3, 0], sizes = [1, 256], strides = [1, 1]} : vector<9x256xf32> to vector<1x256xf32>
    %c1_i32_52 = arith.constant 1 : i32
    %187 = tpu.dynamic_rotate %186 by %c1_i32_52 dim 1 : vector<1x256xf32>, i32 -> vector<1x256xf32>
    %188 = arith.mulf %187, %20 : vector<1x256xf32>
    %189 = arith.addf %185, %188 : vector<1x256xf32>
    %190 = vector.extract_strided_slice %170 {offsets = [5, 0], sizes = [1, 256], strides = [1, 1]} : vector<9x256xf32> to vector<1x256xf32>
    %c255_i32_53 = arith.constant 255 : i32
    %191 = tpu.dynamic_rotate %190 by %c255_i32_53 dim 1 : vector<1x256xf32>, i32 -> vector<1x256xf32>
    %192 = arith.mulf %191, %24 : vector<1x256xf32>
    %193 = arith.addf %189, %192 : vector<1x256xf32>
    %194 = vector.extract_strided_slice %170 {offsets = [6, 0], sizes = [1, 256], strides = [1, 1]} : vector<9x256xf32> to vector<1x256xf32>
    %c241_i32_54 = arith.constant 241 : i32
    %195 = tpu.dynamic_rotate %194 by %c241_i32_54 dim 1 : vector<1x256xf32>, i32 -> vector<1x256xf32>
    %196 = arith.mulf %195, %32 : vector<1x256xf32>
    %197 = arith.mulf %196, %20 : vector<1x256xf32>
    %198 = arith.addf %193, %197 : vector<1x256xf32>
    %199 = vector.extract_strided_slice %170 {offsets = [7, 0], sizes = [1, 256], strides = [1, 1]} : vector<9x256xf32> to vector<1x256xf32>
    %c240_i32_55 = arith.constant 240 : i32
    %200 = tpu.dynamic_rotate %199 by %c240_i32_55 dim 1 : vector<1x256xf32>, i32 -> vector<1x256xf32>
    %201 = arith.mulf %200, %32 : vector<1x256xf32>
    %202 = arith.addf %198, %201 : vector<1x256xf32>
    %203 = vector.extract_strided_slice %170 {offsets = [8, 0], sizes = [1, 256], strides = [1, 1]} : vector<9x256xf32> to vector<1x256xf32>
    %c239_i32_56 = arith.constant 239 : i32
    %204 = tpu.dynamic_rotate %203 by %c239_i32_56 dim 1 : vector<1x256xf32>, i32 -> vector<1x256xf32>
    %205 = arith.mulf %204, %32 : vector<1x256xf32>
    %206 = arith.mulf %205, %24 : vector<1x256xf32>
    %207 = arith.addf %202, %206 : vector<1x256xf32>
    %208 = tpu.concatenate %167, %207 in 0 : vector<1x256xf32>, vector<1x256xf32> -> vector<2x256xf32>
    %209 = vector.broadcast %127 : f32 to vector<2x256xf32>
    %210 = arith.addf %208, %209 : vector<2x256xf32>
    %211 = arith.negf %210 : vector<2x256xf32>
    %212 = math.exp %211 : vector<2x256xf32>
    %cst_57 = arith.constant 1.000000e+00 : f32
    %213 = vector.broadcast %cst_57 : f32 to vector<2x256xf32>
    %214 = arith.addf %213, %212 : vector<2x256xf32>
    %215 = arith.divf %213, %214 : vector<2x256xf32>
    %c0_58 = arith.constant 0 : index
    %c0_59 = arith.constant 0 : index
    %216 = vector.load %arg7[%c0_58, %c0_59] : memref<2x256xf32, #tpu.memory_space<vmem>>, vector<2x256xf32>
    tpu.vector_store %arg7[%c0_58, %c0_59], %215 {strides = array<i32>} : memref<2x256xf32, #tpu.memory_space<vmem>>, vector<2x256xf32>,
    %c2 = arith.constant 2 : index
    %c0_60 = arith.constant 0 : index
    %c0_61 = arith.constant 0 : index
    %217 = vector.load %arg4[%c2, %c0_60, %c0_61] : memref<4x9x32xf32, #tpu.memory_space<vmem>>, vector<1x9x32xf32>
    %218 = vector.shape_cast %217 : vector<1x9x32xf32> to vector<9x32xf32>
    %c2_62 = arith.constant 2 : index
    %219 = memref.load %arg5[%c2_62] : memref<4xf32, #tpu.memory_space<smem>>
    %c0_63 = arith.constant 0 : index
    %c0_64 = arith.constant 0 : index
    %c0_65 = arith.constant 0 : index
    %220 = vector.load %arg2[%c0_63, %c0_64, %c0_65] : memref<2x32x256xf32, #tpu.memory_space<vmem>>, vector<1x32x256xf32>
    %221 = vector.shape_cast %220 : vector<1x32x256xf32> to vector<32x256xf32>
    %cst_66 = arith.constant dense<0.000000e+00> : vector<9x256xf32>
    %222 = tpu.matmul %218, %221, %cst_66 {dimension_numbers = #tpu.dot_dimension_numbers<[1], [0], [0], [1], [0, 0, 1, 1], [], []>} : vector<9x32xf32>, vector<32x256xf32>, vector<9x256xf32> -> vector<9x256xf32>
    %223 = vector.extract_strided_slice %222 {offsets = [4, 0], sizes = [1, 256], strides = [1, 1]} : vector<9x256xf32> to vector<1x256xf32>
    %224 = vector.extract_strided_slice %222 {offsets = [0, 0], sizes = [1, 256], strides = [1, 1]} : vector<9x256xf32> to vector<1x256xf32>
    %c17_i32_67 = arith.constant 17 : i32
    %225 = tpu.dynamic_rotate %224 by %c17_i32_67 dim 1 : vector<1x256xf32>, i32 -> vector<1x256xf32>
    %226 = arith.mulf %225, %28 : vector<1x256xf32>
    %227 = arith.mulf %226, %20 : vector<1x256xf32>
    %228 = arith.addf %223, %227 : vector<1x256xf32>
    %229 = vector.extract_strided_slice %222 {offsets = [1, 0], sizes = [1, 256], strides = [1, 1]} : vector<9x256xf32> to vector<1x256xf32>
    %c16_i32_68 = arith.constant 16 : i32
    %230 = tpu.dynamic_rotate %229 by %c16_i32_68 dim 1 : vector<1x256xf32>, i32 -> vector<1x256xf32>
    %231 = arith.mulf %230, %28 : vector<1x256xf32>
    %232 = arith.addf %228, %231 : vector<1x256xf32>
    %233 = vector.extract_strided_slice %222 {offsets = [2, 0], sizes = [1, 256], strides = [1, 1]} : vector<9x256xf32> to vector<1x256xf32>
    %c15_i32_69 = arith.constant 15 : i32
    %234 = tpu.dynamic_rotate %233 by %c15_i32_69 dim 1 : vector<1x256xf32>, i32 -> vector<1x256xf32>
    %235 = arith.mulf %234, %28 : vector<1x256xf32>
    %236 = arith.mulf %235, %24 : vector<1x256xf32>
    %237 = arith.addf %232, %236 : vector<1x256xf32>
    %238 = vector.extract_strided_slice %222 {offsets = [3, 0], sizes = [1, 256], strides = [1, 1]} : vector<9x256xf32> to vector<1x256xf32>
    %c1_i32_70 = arith.constant 1 : i32
    %239 = tpu.dynamic_rotate %238 by %c1_i32_70 dim 1 : vector<1x256xf32>, i32 -> vector<1x256xf32>
    %240 = arith.mulf %239, %20 : vector<1x256xf32>
    %241 = arith.addf %237, %240 : vector<1x256xf32>
    %242 = vector.extract_strided_slice %222 {offsets = [5, 0], sizes = [1, 256], strides = [1, 1]} : vector<9x256xf32> to vector<1x256xf32>
    %c255_i32_71 = arith.constant 255 : i32
    %243 = tpu.dynamic_rotate %242 by %c255_i32_71 dim 1 : vector<1x256xf32>, i32 -> vector<1x256xf32>
    %244 = arith.mulf %243, %24 : vector<1x256xf32>
    %245 = arith.addf %241, %244 : vector<1x256xf32>
    %246 = vector.extract_strided_slice %222 {offsets = [6, 0], sizes = [1, 256], strides = [1, 1]} : vector<9x256xf32> to vector<1x256xf32>
    %c241_i32_72 = arith.constant 241 : i32
    %247 = tpu.dynamic_rotate %246 by %c241_i32_72 dim 1 : vector<1x256xf32>, i32 -> vector<1x256xf32>
    %248 = arith.mulf %247, %32 : vector<1x256xf32>
    %249 = arith.mulf %248, %20 : vector<1x256xf32>
    %250 = arith.addf %245, %249 : vector<1x256xf32>
    %251 = vector.extract_strided_slice %222 {offsets = [7, 0], sizes = [1, 256], strides = [1, 1]} : vector<9x256xf32> to vector<1x256xf32>
    %c240_i32_73 = arith.constant 240 : i32
    %252 = tpu.dynamic_rotate %251 by %c240_i32_73 dim 1 : vector<1x256xf32>, i32 -> vector<1x256xf32>
    %253 = arith.mulf %252, %32 : vector<1x256xf32>
    %254 = arith.addf %250, %253 : vector<1x256xf32>
    %255 = vector.extract_strided_slice %222 {offsets = [8, 0], sizes = [1, 256], strides = [1, 1]} : vector<9x256xf32> to vector<1x256xf32>
    %c239_i32_74 = arith.constant 239 : i32
    %256 = tpu.dynamic_rotate %255 by %c239_i32_74 dim 1 : vector<1x256xf32>, i32 -> vector<1x256xf32>
    %257 = arith.mulf %256, %32 : vector<1x256xf32>
    %258 = arith.mulf %257, %24 : vector<1x256xf32>
    %259 = arith.addf %254, %258 : vector<1x256xf32>
    %c1_75 = arith.constant 1 : index
    %c0_76 = arith.constant 0 : index
    %c0_77 = arith.constant 0 : index
    %260 = vector.load %arg2[%c1_75, %c0_76, %c0_77] : memref<2x32x256xf32, #tpu.memory_space<vmem>>, vector<1x32x256xf32>
    %261 = vector.shape_cast %260 : vector<1x32x256xf32> to vector<32x256xf32>
    %cst_78 = arith.constant dense<0.000000e+00> : vector<9x256xf32>
    %262 = tpu.matmul %218, %261, %cst_78 {dimension_numbers = #tpu.dot_dimension_numbers<[1], [0], [0], [1], [0, 0, 1, 1], [], []>} : vector<9x32xf32>, vector<32x256xf32>, vector<9x256xf32> -> vector<9x256xf32>
    %263 = vector.extract_strided_slice %262 {offsets = [4, 0], sizes = [1, 256], strides = [1, 1]} : vector<9x256xf32> to vector<1x256xf32>
    %264 = vector.extract_strided_slice %262 {offsets = [0, 0], sizes = [1, 256], strides = [1, 1]} : vector<9x256xf32> to vector<1x256xf32>
    %c17_i32_79 = arith.constant 17 : i32
    %265 = tpu.dynamic_rotate %264 by %c17_i32_79 dim 1 : vector<1x256xf32>, i32 -> vector<1x256xf32>
    %266 = arith.mulf %265, %28 : vector<1x256xf32>
    %267 = arith.mulf %266, %20 : vector<1x256xf32>
    %268 = arith.addf %263, %267 : vector<1x256xf32>
    %269 = vector.extract_strided_slice %262 {offsets = [1, 0], sizes = [1, 256], strides = [1, 1]} : vector<9x256xf32> to vector<1x256xf32>
    %c16_i32_80 = arith.constant 16 : i32
    %270 = tpu.dynamic_rotate %269 by %c16_i32_80 dim 1 : vector<1x256xf32>, i32 -> vector<1x256xf32>
    %271 = arith.mulf %270, %28 : vector<1x256xf32>
    %272 = arith.addf %268, %271 : vector<1x256xf32>
    %273 = vector.extract_strided_slice %262 {offsets = [2, 0], sizes = [1, 256], strides = [1, 1]} : vector<9x256xf32> to vector<1x256xf32>
    %c15_i32_81 = arith.constant 15 : i32
    %274 = tpu.dynamic_rotate %273 by %c15_i32_81 dim 1 : vector<1x256xf32>, i32 -> vector<1x256xf32>
    %275 = arith.mulf %274, %28 : vector<1x256xf32>
    %276 = arith.mulf %275, %24 : vector<1x256xf32>
    %277 = arith.addf %272, %276 : vector<1x256xf32>
    %278 = vector.extract_strided_slice %262 {offsets = [3, 0], sizes = [1, 256], strides = [1, 1]} : vector<9x256xf32> to vector<1x256xf32>
    %c1_i32_82 = arith.constant 1 : i32
    %279 = tpu.dynamic_rotate %278 by %c1_i32_82 dim 1 : vector<1x256xf32>, i32 -> vector<1x256xf32>
    %280 = arith.mulf %279, %20 : vector<1x256xf32>
    %281 = arith.addf %277, %280 : vector<1x256xf32>
    %282 = vector.extract_strided_slice %262 {offsets = [5, 0], sizes = [1, 256], strides = [1, 1]} : vector<9x256xf32> to vector<1x256xf32>
    %c255_i32_83 = arith.constant 255 : i32
    %283 = tpu.dynamic_rotate %282 by %c255_i32_83 dim 1 : vector<1x256xf32>, i32 -> vector<1x256xf32>
    %284 = arith.mulf %283, %24 : vector<1x256xf32>
    %285 = arith.addf %281, %284 : vector<1x256xf32>
    %286 = vector.extract_strided_slice %262 {offsets = [6, 0], sizes = [1, 256], strides = [1, 1]} : vector<9x256xf32> to vector<1x256xf32>
    %c241_i32_84 = arith.constant 241 : i32
    %287 = tpu.dynamic_rotate %286 by %c241_i32_84 dim 1 : vector<1x256xf32>, i32 -> vector<1x256xf32>
    %288 = arith.mulf %287, %32 : vector<1x256xf32>
    %289 = arith.mulf %288, %20 : vector<1x256xf32>
    %290 = arith.addf %285, %289 : vector<1x256xf32>
    %291 = vector.extract_strided_slice %262 {offsets = [7, 0], sizes = [1, 256], strides = [1, 1]} : vector<9x256xf32> to vector<1x256xf32>
    %c240_i32_85 = arith.constant 240 : i32
    %292 = tpu.dynamic_rotate %291 by %c240_i32_85 dim 1 : vector<1x256xf32>, i32 -> vector<1x256xf32>
    %293 = arith.mulf %292, %32 : vector<1x256xf32>
    %294 = arith.addf %290, %293 : vector<1x256xf32>
    %295 = vector.extract_strided_slice %262 {offsets = [8, 0], sizes = [1, 256], strides = [1, 1]} : vector<9x256xf32> to vector<1x256xf32>
    %c239_i32_86 = arith.constant 239 : i32
    %296 = tpu.dynamic_rotate %295 by %c239_i32_86 dim 1 : vector<1x256xf32>, i32 -> vector<1x256xf32>
    %297 = arith.mulf %296, %32 : vector<1x256xf32>
    %298 = arith.mulf %297, %24 : vector<1x256xf32>
    %299 = arith.addf %294, %298 : vector<1x256xf32>
    %300 = tpu.concatenate %259, %299 in 0 : vector<1x256xf32>, vector<1x256xf32> -> vector<2x256xf32>
    %301 = vector.broadcast %219 : f32 to vector<2x256xf32>
    %302 = arith.addf %300, %301 : vector<2x256xf32>
    %303 = arith.negf %302 : vector<2x256xf32>
    %304 = math.exp %303 : vector<2x256xf32>
    %cst_87 = arith.constant 1.000000e+00 : f32
    %305 = vector.broadcast %cst_87 : f32 to vector<2x256xf32>
    %306 = arith.addf %305, %304 : vector<2x256xf32>
    %307 = arith.divf %305, %306 : vector<2x256xf32>
    %c0_88 = arith.constant 0 : index
    %c0_89 = arith.constant 0 : index
    %308 = vector.load %arg8[%c0_88, %c0_89] : memref<2x256xf32, #tpu.memory_space<vmem>>, vector<2x256xf32>
    tpu.vector_store %arg8[%c0_88, %c0_89], %307 {strides = array<i32>} : memref<2x256xf32, #tpu.memory_space<vmem>>, vector<2x256xf32>,
    %c3 = arith.constant 3 : index
    %c0_90 = arith.constant 0 : index
    %c0_91 = arith.constant 0 : index
    %309 = vector.load %arg4[%c3, %c0_90, %c0_91] : memref<4x9x32xf32, #tpu.memory_space<vmem>>, vector<1x9x32xf32>
    %310 = vector.shape_cast %309 : vector<1x9x32xf32> to vector<9x32xf32>
    %c3_92 = arith.constant 3 : index
    %311 = memref.load %arg5[%c3_92] : memref<4xf32, #tpu.memory_space<smem>>
    %c0_93 = arith.constant 0 : index
    %c0_94 = arith.constant 0 : index
    %c0_95 = arith.constant 0 : index
    %312 = vector.load %arg3[%c0_93, %c0_94, %c0_95] : memref<2x32x256xf32, #tpu.memory_space<vmem>>, vector<1x32x256xf32>
    %313 = vector.shape_cast %312 : vector<1x32x256xf32> to vector<32x256xf32>
    %cst_96 = arith.constant dense<0.000000e+00> : vector<9x256xf32>
    %314 = tpu.matmul %310, %313, %cst_96 {dimension_numbers = #tpu.dot_dimension_numbers<[1], [0], [0], [1], [0, 0, 1, 1], [], []>} : vector<9x32xf32>, vector<32x256xf32>, vector<9x256xf32> -> vector<9x256xf32>
    %315 = vector.extract_strided_slice %314 {offsets = [4, 0], sizes = [1, 256], strides = [1, 1]} : vector<9x256xf32> to vector<1x256xf32>
    %316 = vector.extract_strided_slice %314 {offsets = [0, 0], sizes = [1, 256], strides = [1, 1]} : vector<9x256xf32> to vector<1x256xf32>
    %c17_i32_97 = arith.constant 17 : i32
    %317 = tpu.dynamic_rotate %316 by %c17_i32_97 dim 1 : vector<1x256xf32>, i32 -> vector<1x256xf32>
    %318 = arith.mulf %317, %28 : vector<1x256xf32>
    %319 = arith.mulf %318, %20 : vector<1x256xf32>
    %320 = arith.addf %315, %319 : vector<1x256xf32>
    %321 = vector.extract_strided_slice %314 {offsets = [1, 0], sizes = [1, 256], strides = [1, 1]} : vector<9x256xf32> to vector<1x256xf32>
    %c16_i32_98 = arith.constant 16 : i32
    %322 = tpu.dynamic_rotate %321 by %c16_i32_98 dim 1 : vector<1x256xf32>, i32 -> vector<1x256xf32>
    %323 = arith.mulf %322, %28 : vector<1x256xf32>
    %324 = arith.addf %320, %323 : vector<1x256xf32>
    %325 = vector.extract_strided_slice %314 {offsets = [2, 0], sizes = [1, 256], strides = [1, 1]} : vector<9x256xf32> to vector<1x256xf32>
    %c15_i32_99 = arith.constant 15 : i32
    %326 = tpu.dynamic_rotate %325 by %c15_i32_99 dim 1 : vector<1x256xf32>, i32 -> vector<1x256xf32>
    %327 = arith.mulf %326, %28 : vector<1x256xf32>
    %328 = arith.mulf %327, %24 : vector<1x256xf32>
    %329 = arith.addf %324, %328 : vector<1x256xf32>
    %330 = vector.extract_strided_slice %314 {offsets = [3, 0], sizes = [1, 256], strides = [1, 1]} : vector<9x256xf32> to vector<1x256xf32>
    %c1_i32_100 = arith.constant 1 : i32
    %331 = tpu.dynamic_rotate %330 by %c1_i32_100 dim 1 : vector<1x256xf32>, i32 -> vector<1x256xf32>
    %332 = arith.mulf %331, %20 : vector<1x256xf32>
    %333 = arith.addf %329, %332 : vector<1x256xf32>
    %334 = vector.extract_strided_slice %314 {offsets = [5, 0], sizes = [1, 256], strides = [1, 1]} : vector<9x256xf32> to vector<1x256xf32>
    %c255_i32_101 = arith.constant 255 : i32
    %335 = tpu.dynamic_rotate %334 by %c255_i32_101 dim 1 : vector<1x256xf32>, i32 -> vector<1x256xf32>
    %336 = arith.mulf %335, %24 : vector<1x256xf32>
    %337 = arith.addf %333, %336 : vector<1x256xf32>
    %338 = vector.extract_strided_slice %314 {offsets = [6, 0], sizes = [1, 256], strides = [1, 1]} : vector<9x256xf32> to vector<1x256xf32>
    %c241_i32_102 = arith.constant 241 : i32
    %339 = tpu.dynamic_rotate %338 by %c241_i32_102 dim 1 : vector<1x256xf32>, i32 -> vector<1x256xf32>
    %340 = arith.mulf %339, %32 : vector<1x256xf32>
    %341 = arith.mulf %340, %20 : vector<1x256xf32>
    %342 = arith.addf %337, %341 : vector<1x256xf32>
    %343 = vector.extract_strided_slice %314 {offsets = [7, 0], sizes = [1, 256], strides = [1, 1]} : vector<9x256xf32> to vector<1x256xf32>
    %c240_i32_103 = arith.constant 240 : i32
    %344 = tpu.dynamic_rotate %343 by %c240_i32_103 dim 1 : vector<1x256xf32>, i32 -> vector<1x256xf32>
    %345 = arith.mulf %344, %32 : vector<1x256xf32>
    %346 = arith.addf %342, %345 : vector<1x256xf32>
    %347 = vector.extract_strided_slice %314 {offsets = [8, 0], sizes = [1, 256], strides = [1, 1]} : vector<9x256xf32> to vector<1x256xf32>
    %c239_i32_104 = arith.constant 239 : i32
    %348 = tpu.dynamic_rotate %347 by %c239_i32_104 dim 1 : vector<1x256xf32>, i32 -> vector<1x256xf32>
    %349 = arith.mulf %348, %32 : vector<1x256xf32>
    %350 = arith.mulf %349, %24 : vector<1x256xf32>
    %351 = arith.addf %346, %350 : vector<1x256xf32>
    %c1_105 = arith.constant 1 : index
    %c0_106 = arith.constant 0 : index
    %c0_107 = arith.constant 0 : index
    %352 = vector.load %arg3[%c1_105, %c0_106, %c0_107] : memref<2x32x256xf32, #tpu.memory_space<vmem>>, vector<1x32x256xf32>
    %353 = vector.shape_cast %352 : vector<1x32x256xf32> to vector<32x256xf32>
    %cst_108 = arith.constant dense<0.000000e+00> : vector<9x256xf32>
    %354 = tpu.matmul %310, %353, %cst_108 {dimension_numbers = #tpu.dot_dimension_numbers<[1], [0], [0], [1], [0, 0, 1, 1], [], []>} : vector<9x32xf32>, vector<32x256xf32>, vector<9x256xf32> -> vector<9x256xf32>
    %355 = vector.extract_strided_slice %354 {offsets = [4, 0], sizes = [1, 256], strides = [1, 1]} : vector<9x256xf32> to vector<1x256xf32>
    %356 = vector.extract_strided_slice %354 {offsets = [0, 0], sizes = [1, 256], strides = [1, 1]} : vector<9x256xf32> to vector<1x256xf32>
    %c17_i32_109 = arith.constant 17 : i32
    %357 = tpu.dynamic_rotate %356 by %c17_i32_109 dim 1 : vector<1x256xf32>, i32 -> vector<1x256xf32>
    %358 = arith.mulf %357, %28 : vector<1x256xf32>
    %359 = arith.mulf %358, %20 : vector<1x256xf32>
    %360 = arith.addf %355, %359 : vector<1x256xf32>
    %361 = vector.extract_strided_slice %354 {offsets = [1, 0], sizes = [1, 256], strides = [1, 1]} : vector<9x256xf32> to vector<1x256xf32>
    %c16_i32_110 = arith.constant 16 : i32
    %362 = tpu.dynamic_rotate %361 by %c16_i32_110 dim 1 : vector<1x256xf32>, i32 -> vector<1x256xf32>
    %363 = arith.mulf %362, %28 : vector<1x256xf32>
    %364 = arith.addf %360, %363 : vector<1x256xf32>
    %365 = vector.extract_strided_slice %354 {offsets = [2, 0], sizes = [1, 256], strides = [1, 1]} : vector<9x256xf32> to vector<1x256xf32>
    %c15_i32_111 = arith.constant 15 : i32
    %366 = tpu.dynamic_rotate %365 by %c15_i32_111 dim 1 : vector<1x256xf32>, i32 -> vector<1x256xf32>
    %367 = arith.mulf %366, %28 : vector<1x256xf32>
    %368 = arith.mulf %367, %24 : vector<1x256xf32>
    %369 = arith.addf %364, %368 : vector<1x256xf32>
    %370 = vector.extract_strided_slice %354 {offsets = [3, 0], sizes = [1, 256], strides = [1, 1]} : vector<9x256xf32> to vector<1x256xf32>
    %c1_i32_112 = arith.constant 1 : i32
    %371 = tpu.dynamic_rotate %370 by %c1_i32_112 dim 1 : vector<1x256xf32>, i32 -> vector<1x256xf32>
    %372 = arith.mulf %371, %20 : vector<1x256xf32>
    %373 = arith.addf %369, %372 : vector<1x256xf32>
    %374 = vector.extract_strided_slice %354 {offsets = [5, 0], sizes = [1, 256], strides = [1, 1]} : vector<9x256xf32> to vector<1x256xf32>
    %c255_i32_113 = arith.constant 255 : i32
    %375 = tpu.dynamic_rotate %374 by %c255_i32_113 dim 1 : vector<1x256xf32>, i32 -> vector<1x256xf32>
    %376 = arith.mulf %375, %24 : vector<1x256xf32>
    %377 = arith.addf %373, %376 : vector<1x256xf32>
    %378 = vector.extract_strided_slice %354 {offsets = [6, 0], sizes = [1, 256], strides = [1, 1]} : vector<9x256xf32> to vector<1x256xf32>
    %c241_i32_114 = arith.constant 241 : i32
    %379 = tpu.dynamic_rotate %378 by %c241_i32_114 dim 1 : vector<1x256xf32>, i32 -> vector<1x256xf32>
    %380 = arith.mulf %379, %32 : vector<1x256xf32>
    %381 = arith.mulf %380, %20 : vector<1x256xf32>
    %382 = arith.addf %377, %381 : vector<1x256xf32>
    %383 = vector.extract_strided_slice %354 {offsets = [7, 0], sizes = [1, 256], strides = [1, 1]} : vector<9x256xf32> to vector<1x256xf32>
    %c240_i32_115 = arith.constant 240 : i32
    %384 = tpu.dynamic_rotate %383 by %c240_i32_115 dim 1 : vector<1x256xf32>, i32 -> vector<1x256xf32>
    %385 = arith.mulf %384, %32 : vector<1x256xf32>
    %386 = arith.addf %382, %385 : vector<1x256xf32>
    %387 = vector.extract_strided_slice %354 {offsets = [8, 0], sizes = [1, 256], strides = [1, 1]} : vector<9x256xf32> to vector<1x256xf32>
    %c239_i32_116 = arith.constant 239 : i32
    %388 = tpu.dynamic_rotate %387 by %c239_i32_116 dim 1 : vector<1x256xf32>, i32 -> vector<1x256xf32>
    %389 = arith.mulf %388, %32 : vector<1x256xf32>
    %390 = arith.mulf %389, %24 : vector<1x256xf32>
    %391 = arith.addf %386, %390 : vector<1x256xf32>
    %392 = tpu.concatenate %351, %391 in 0 : vector<1x256xf32>, vector<1x256xf32> -> vector<2x256xf32>
    %393 = vector.broadcast %311 : f32 to vector<2x256xf32>
    %394 = arith.addf %392, %393 : vector<2x256xf32>
    %395 = arith.negf %394 : vector<2x256xf32>
    %396 = math.exp %395 : vector<2x256xf32>
    %cst_117 = arith.constant 1.000000e+00 : f32
    %397 = vector.broadcast %cst_117 : f32 to vector<2x256xf32>
    %398 = arith.addf %397, %396 : vector<2x256xf32>
    %399 = arith.divf %397, %398 : vector<2x256xf32>
    %c0_118 = arith.constant 0 : index
    %c0_119 = arith.constant 0 : index
    %400 = vector.load %arg9[%c0_118, %c0_119] : memref<2x256xf32, #tpu.memory_space<vmem>>, vector<2x256xf32>
    tpu.vector_store %arg9[%c0_118, %c0_119], %399 {strides = array<i32>} : memref<2x256xf32, #tpu.memory_space<vmem>>, vector<2x256xf32>,
    return
  }
}

</mosaic_0001>

<llo_original>
// kernel: tpu_custom_call.1
$region0: #{tpu_custom_call.1}
  #allocation0 [shape = 'u32[]', space=smem, size = 0x4, offset = 0x4, fixed_abs, tag = 'smem constant byte address 0x4 - core index']
  #allocation1 [shape = 'u32[144,128]{1,0:T(1,128)}', space=vmem, size = 0x12000, scoped, tag = 'internal scratch']
  %s0 = inlined_call_operand.hbm [shape: f32[2,32,256], index: 0, kind: input, shape index: {}]
  %s1 = inlined_call_operand.hbm [shape: f32[2,32,256], index: 1, kind: input, shape index: {}]
  %s2 = inlined_call_operand.hbm [shape: f32[2,32,256], index: 2, kind: input, shape index: {}]
  %s3 = inlined_call_operand.hbm [shape: f32[2,32,256], index: 3, kind: input, shape index: {}]
  %s4 = inlined_call_operand.vmem [shape: f32[4,9,32], index: 4, kind: input, shape index: {}]
  %s5 = inlined_call_operand.vmem [shape: f32[4], index: 5, kind: input, shape index: {}]
  %s6 = inlined_call_operand.hbm [shape: f32[2,256], index: 6, kind: output, shape index: {0}]
  %s7 = inlined_call_operand.hbm [shape: f32[2,256], index: 7, kind: output, shape index: {1}]
  %s8 = inlined_call_operand.hbm [shape: f32[2,256], index: 8, kind: output, shape index: {2}]
  %s9 = inlined_call_operand.hbm [shape: f32[2,256], index: 9, kind: output, shape index: {3}]
  %10 = xla_tuple %s6, %s7, %s8, %s9
  %s11 = sld [smem:[#allocation0]]
  $region78: #{tpu_custom_call.1} parent=0
    _
  %s13 = ssub.s32 1, %s11
  %s14 = scalar_select 0, %s13, %s11
  $region1: #{tpu_custom_call.1} parent=0
    #allocation2 [shape = 'u8[65536]{0}', space=vmem, size = 0x10000, scoped, tag = 'input window, operand 0, single buffered']
    #allocation3 [shape = 's32[1]{0}', space=sflag, size = 0x4, scoped, tag = 'scoped memory for tpu_custom_call.1']
    #allocation4 [shape = 's32[1]{0}', space=sflag, size = 0x4, scoped, tag = 'scoped memory for tpu_custom_call.1']
    #allocation5 [shape = 's32[1]{0}', space=sflag, size = 0x4, scoped, tag = 'scoped memory for tpu_custom_call.1']
    #allocation6 [shape = 'u8[65536]{0}', space=vmem, size = 0x10000, scoped, tag = 'input window, operand 1, single buffered']
    #allocation7 [shape = 's32[1]{0}', space=sflag, size = 0x4, scoped, tag = 'scoped memory for tpu_custom_call.1']
    #allocation8 [shape = 'u8[65536]{0}', space=vmem, size = 0x10000, scoped, tag = 'input window, operand 2, single buffered']
    #allocation9 [shape = 'u8[65536]{0}', space=vmem, size = 0x10000, scoped, tag = 'input window, operand 3, single buffered']
    #allocation10 [shape = 's32[1]{0}', space=sflag, size = 0x4, scoped, tag = 'scoped memory for tpu_custom_call.1']
    #allocation11 [shape = 'u8[512]{0}', space=smem, size = 0x200, scoped, tag = 'input window, operand 5, single buffered']
    #allocation12 [shape = 'u8[2048]{0}', space=vmem, size = 0x800, scoped, tag = 'output window, operand 0, single buffered']
    #allocation13 [shape = 'u8[2048]{0}', space=vmem, size = 0x800, scoped, tag = 'output window, operand 1, single buffered']
    #allocation14 [shape = 's32[1]{0}', space=sflag, size = 0x4, scoped, tag = 'scoped memory for tpu_custom_call.1']
    #allocation15 [shape = 'u8[2048]{0}', space=vmem, size = 0x800, scoped, tag = 'output window, operand 2, single buffered']
    #allocation16 [shape = 'u8[2048]{0}', space=vmem, size = 0x800, scoped, tag = 'output window, operand 3, single buffered']
    #allocation17 [shape = 's32[1]{0}', space=sflag, size = 0x4, scoped, tag = 'scoped memory for tpu_custom_call.1']
    %15 = vsyncpa [#allocation3], 0
    %16 = vsyncpa [#allocation7], 0
    %17 = vsyncpa [#allocation10], 0
    %18 = vsyncpa [#allocation5], 0
    %19 = vsyncpa [#allocation4], 0
    %20 = vsyncpa [#allocation14], 0
    %21 = vsyncpa [#allocation17], 0
    // Predicated region
    $region2: #{tpu_custom_call.1} parent=1 // pred_check
      _
    $region3: #{tpu_custom_call.1} parent=1 // pred_check_branch
      %23 = sbr.rel (0) target = $region5
    $region4: #{tpu_custom_call.1} parent=1 // pred_region
      %s25 = ssub.s32 2048, 2048
      %26 = vsyncadd [#allocation3], %s25
      %s27 = sshll.u32 [#allocation2], 4
      %s28 = int_to_ptr.vmem [resolvable:$true] %s27
      %33 = dma.hbm_to_vmem [thread:$0]  %s0, 2048, %s28, [#allocation3], 256, 256, 16
    $region5: #{tpu_custom_call.1} parent=1 // pred_fallthru
      _
    // Predicated region
    $region6: #{tpu_custom_call.1} parent=1 // pred_check
      _
    $region7: #{tpu_custom_call.1} parent=1 // pred_check_branch
      %35 = sbr.rel (0) target = $region9
    $region8: #{tpu_custom_call.1} parent=1 // pred_region
      %s37 = ssub.s32 2048, 2048
      %38 = vsyncadd [#allocation7], %s37
      %s39 = sshll.u32 [#allocation6], 4
      %s40 = int_to_ptr.vmem [resolvable:$true] %s39
      %45 = dma.hbm_to_vmem [thread:$0]  %s1, 2048, %s40, [#allocation7], 256, 256, 16
    $region9: #{tpu_custom_call.1} parent=1 // pred_fallthru
      _
    // Predicated region
    $region10: #{tpu_custom_call.1} parent=1 // pred_check
      _
    $region11: #{tpu_custom_call.1} parent=1 // pred_check_branch
      %47 = sbr.rel (0) target = $region13
    $region12: #{tpu_custom_call.1} parent=1 // pred_region
      %s49 = ssub.s32 2048, 2048
      %50 = vsyncadd [#allocation7], %s49
      %s51 = sshll.u32 [#allocation8], 4
      %s52 = int_to_ptr.vmem [resolvable:$true] %s51
      %57 = dma.hbm_to_vmem [thread:$0]  %s2, 2048, %s52, [#allocation7], 256, 256, 16
    $region13: #{tpu_custom_call.1} parent=1 // pred_fallthru
      _
    // Predicated region
    $region14: #{tpu_custom_call.1} parent=1 // pred_check
      _
    $region15: #{tpu_custom_call.1} parent=1 // pred_check_branch
      %59 = sbr.rel (0) target = $region17
    $region16: #{tpu_custom_call.1} parent=1 // pred_region
      %s61 = ssub.s32 2048, 2048
      %62 = vsyncadd [#allocation10], %s61
      %s63 = sshll.u32 [#allocation9], 4
      %s64 = int_to_ptr.vmem [resolvable:$true] %s63
      %69 = dma.hbm_to_vmem [thread:$0]  %s3, 2048, %s64, [#allocation10], 256, 256, 16
    $region17: #{tpu_custom_call.1} parent=1 // pred_fallthru
      _
    // Predicated region
    $region18: #{tpu_custom_call.1} parent=1 // pred_check
      _
    $region19: #{tpu_custom_call.1} parent=1 // pred_check_branch
      %71 = sbr.rel (0) target = $region21
    $region20: #{tpu_custom_call.1} parent=1 // pred_region
      _
    $region21: #{tpu_custom_call.1} parent=1 // pred_fallthru
      _
    // Predicated region
    $region22: #{tpu_custom_call.1} parent=1 // pred_check
      _
    $region23: #{tpu_custom_call.1} parent=1 // pred_check_branch
      %73 = sbr.rel (0) target = $region25
    $region24: #{tpu_custom_call.1} parent=1 // pred_region
      %s75 = ssub.s32 16, 16
      %76 = vsyncadd [#allocation5], %s75
      %s78 = sshll.u32 %s5, 4
      %s79 = int_to_ptr.vmem [resolvable:$true] %s78
      %81 = dma.vmem_to_smem %s79, 16, [#allocation11], [#allocation5]
    $region25: #{tpu_custom_call.1} parent=1 // pred_fallthru
      _
    // Predicated region
    $region26: #{tpu_custom_call.1} parent=1 // pred_check
      _
    $region27: #{tpu_custom_call.1} parent=1 // pred_check_branch
      %83 = sbr.rel (0) target = $region29
    $region28: #{tpu_custom_call.1} parent=1 // pred_region
      %84 = dma.done [#allocation3], 2048
    $region29: #{tpu_custom_call.1} parent=1 // pred_fallthru
      _
    // Predicated region
    $region30: #{tpu_custom_call.1} parent=1 // pred_check
      _
    $region31: #{tpu_custom_call.1} parent=1 // pred_check_branch
      %86 = sbr.rel (0) target = $region33
    $region32: #{tpu_custom_call.1} parent=1 // pred_region
      %87 = dma.done [#allocation7], 2048
    $region33: #{tpu_custom_call.1} parent=1 // pred_fallthru
      _
    // Predicated region
    $region34: #{tpu_custom_call.1} parent=1 // pred_check
      _
    $region35: #{tpu_custom_call.1} parent=1 // pred_check_branch
      %89 = sbr.rel (0) target = $region37
    $region36: #{tpu_custom_call.1} parent=1 // pred_region
      %90 = dma.done [#allocation7], 2048
    $region37: #{tpu_custom_call.1} parent=1 // pred_fallthru
      _
    // Predicated region
    $region38: #{tpu_custom_call.1} parent=1 // pred_check
      _
    $region39: #{tpu_custom_call.1} parent=1 // pred_check_branch
      %92 = sbr.rel (0) target = $region41
    $region40: #{tpu_custom_call.1} parent=1 // pred_region
      %93 = dma.done [#allocation10], 2048
    $region41: #{tpu_custom_call.1} parent=1 // pred_fallthru
      _
    // Predicated region
    $region42: #{tpu_custom_call.1} parent=1 // pred_check
      _
    $region43: #{tpu_custom_call.1} parent=1 // pred_check_branch
      %95 = sbr.rel (0) target = $region45
    $region44: #{tpu_custom_call.1} parent=1 // pred_region
      %96 = dma.done [#allocation5], 16
    $region45: #{tpu_custom_call.1} parent=1 // pred_fallthru
      _
    %97 = sfence
    %v98 = vlaneseq
    %v99 = vand.u32 %v98, 127
    %v100 = vadd.s32 %v99, 128
    %vm101 = vcmp.lt.s32.totalorder %v99, 0
    %v102 = vsub.s32 0, %v99
    %v103 = vsel %vm101, %v102, %v99
    %v104 = vshrl.u32 %v103, 4
    %v105 = vand.u32 %v103, 15
    %v106 = vsub.s32 0, %v105
    %v107 = vsel %vm101, %v106, %v105
    %vm108 = vcmp.lt.s32.totalorder %v100, 0
    %v109 = vsub.s32 0, %v100
    %v110 = vsel %vm108, %v109, %v100
    %v111 = vshrl.u32 %v110, 4
    %v112 = vand.u32 %v110, 15
    %v113 = vsub.s32 0, %v112
    %v114 = vsel %vm108, %v113, %v112
    %vm115 = vcmp.ne.s32.totalorder %v107, 0
    %vm116 = vcmp.ne.s32.totalorder %v114, 0
    %vm117 = vcmp.lt.s32.totalorder %v107, 0
    %vm118 = vcmp.lt.s32.totalorder %v114, 0
    %vm119 = vmand %vm117, %vm115
    %vm120 = vmand %vm118, %vm116
    %v121 = vadd.s32 %v107, 16
    %v122 = vadd.s32 %v114, 16
    %v123 = vsel %vm119, %v121, %v107
    %v124 = vsel %vm120, %v122, %v114
    %vm125 = vcmp.gt.s32.totalorder %v123, 0
    %vm126 = vcmp.gt.s32.totalorder %v124, 0
    %v127 = vsel %vm125, 1, 0
    %v128 = vsel %vm126, 1, 0
    %v129 = vcvt.s32.f32 %v127
    %v130 = vcvt.s32.f32 %v128
    %vm131 = vcmp.lt.s32.totalorder %v123, 15
    %vm132 = vcmp.lt.s32.totalorder %v124, 15
    %v133 = vsel %vm131, 1, 0
    %v134 = vsel %vm132, 1, 0
    %v135 = vcvt.s32.f32 %v133
    %v136 = vcvt.s32.f32 %v134
    %vm137 = vcmp.ge.s32.totalorder %v99, 16
    %vm138 = vcmp.ge.s32.totalorder %v100, 16
    %v139 = vsel %vm137, 1, 0
    %v140 = vsel %vm138, 1, 0
    %v141 = vcvt.s32.f32 %v139
    %v142 = vcvt.s32.f32 %v140
    %vm143 = vcmp.lt.s32.totalorder %v99, 240
    %vm144 = vcmp.lt.s32.totalorder %v100, 240
    %v145 = vsel %vm143, 1, 0
    %v146 = vsel %vm144, 1, 0
    %v147 = vcvt.s32.f32 %v145
    %v148 = vcvt.s32.f32 %v146
    %v149 = vld [vmem:[%s4] sm:$0xff]
    %v150 = vld [vmem:[%s4 + $0x8] sm:$0x1]
    %s151 = sld [smem:[#allocation11]]
    %v152 = vld [vmem:[#allocation2] sm:$0xff]
    %v153 = vld [vmem:[#allocation2 + $0x8] sm:$0xff]
    %v154 = vld [vmem:[#allocation2 + $0x10] sm:$0xff]
    %v155 = vld [vmem:[#allocation2 + $0x18] sm:$0xff]
    %v156 = vld [vmem:[#allocation2 + $0x20] sm:$0xff]
    %v157 = vld [vmem:[#allocation2 + $0x28] sm:$0xff]
    %v158 = vld [vmem:[#allocation2 + $0x30] sm:$0xff]
    %v159 = vld [vmem:[#allocation2 + $0x38] sm:$0xff]
    %vm160 = vcmask 261120
    %v162 = vsel %vm160, %v149, 0
    %v165 = vsel %vm160, %v150, 0
    %167 = vmatprep.subr.mxu0 %v153
    %168 = vmatpush1.msra.mxu0 %v152
    %169 = vmatprep.subr.mxu0 %v155
    %170 = vmatpush1.msra.mxu0 %v154
    %171 = vmatprep.subr.mxu0 %v157
    %172 = vmatpush1.msra.mxu0 %v156
    %173 = vmatprep.subr.mxu0 %v159
    %174 = vmatpush1.msra.mxu0 %v158
    %175 = vmatprep.subr.mxu0 0.0
    %176 = vmatpush1.msra.mxu0 0.0
    %177 = vmatprep.subr.mxu0 0.0
    %178 = vmatpush1.msra.mxu0 0.0
    %179 = vmatprep.subr.mxu0 0.0
    %180 = vmatpush1.msra.mxu0 0.0
    %181 = vmatprep.subr.mxu0 0.0
    %182 = vmatpush1.msra.mxu0 0.0
    %183 = vmatprep.subr.mxu0 0.0
    %184 = vmatpush1.msra.mxu0 0.0
    %185 = vmatprep.subr.mxu0 0.0
    %186 = vmatpush1.msra.mxu0 0.0
    %187 = vmatprep.subr.mxu0 0.0
    %188 = vmatpush1.msra.mxu0 0.0
    %189 = vmatprep.subr.mxu0 0.0
    %190 = vmatpush1.msra.mxu0 0.0
    %191 = vmatprep.subr.mxu0 0.0
    %192 = vmatpush1.msra.mxu0 0.0
    %193 = vmatprep.subr.mxu0 0.0
    %194 = vmatpush1.msra.mxu0 0.0
    %195 = vmatprep.subr.mxu0 0.0
    %196 = vmatpush1.msra.mxu0 0.0
    %197 = vmatprep.subr.mxu0 0.0
    %198 = vmatpush1.msra.mxu0 0.0
    %199 = vmatprep.subr.mxu0 0.0
    %200 = vmatpush1.msra.mxu0 0.0
    %201 = vmatprep.subr.mxu0 0.0
    %202 = vmatpush1.msra.mxu0 0.0
    %203 = vmatprep.subr.mxu0 0.0
    %204 = vmatpush1.msra.mxu0 0.0
    %205 = vmatprep.subr.mxu0 0.0
    %206 = vmatpush1.msra.mxu0 0.0
    %207 = vmatprep.subr.mxu0 0.0
    %208 = vmatpush1.msra.mxu0 0.0
    %209 = vmatprep.subr.mxu0 0.0
    %210 = vmatpush1.msra.mxu0 0.0
    %211 = vmatprep.subr.mxu0 0.0
    %212 = vmatpush1.msra.mxu0 0.0
    %213 = vmatprep.subr.mxu0 0.0
    %214 = vmatpush1.msra.mxu0 0.0
    %215 = vmatprep.subr.mxu0 0.0
    %216 = vmatpush1.msra.mxu0 0.0
    %217 = vmatprep.subr.mxu0 0.0
    %218 = vmatpush1.msra.mxu0 0.0
    %219 = vmatprep.subr.mxu0 0.0
    %220 = vmatpush1.msra.mxu0 0.0
    %221 = vmatprep.subr.mxu0 0.0
    %222 = vmatpush1.msra.mxu0 0.0
    %223 = vmatprep.subr.mxu0 0.0
    %224 = vmatpush1.msra.mxu0 0.0
    %225 = vmatprep.subr.mxu0 0.0
    %226 = vmatpush1.msra.mxu0 0.0
    %227 = vmatprep.subr.mxu0 0.0
    %228 = vmatpush1.msra.mxu0 0.0
    %229 = vmatprep.subr.mxu0 0.0
    %230 = vmatpush1.msra.mxu0 0.0
    %231 = vmatprep.mubr.f32.mxu0 0.0
    %232 = vmatmul.mubr.f32.gmra.mrb[0].mxu0 %v162
    %v233 = vpop.f32.mrb[0].mxu0
    %v234 = vadd.f32 0.0, %v233
    %v235 = vpop.f32.mrb[0].mxu0
    %v236 = vadd.f32 0.0, %v235
    %237 = vmatprep.mubr.f32.mxu0 0.0
    %238 = vmatmul.mubr.f32.gmra.mrb[0].mxu0 %v165
    %v239 = vpop.f32.mrb[0].mxu0
    %v240 = vadd.f32 0.0, %v239
    %v241 = vpop.f32.mrb[0].mxu0
    %v242 = vadd.f32 0.0, %v241
    %243 = vdwg.mxu0
    %244 = vrot.lane.b32.xlu0 %v234, 17
    %v245 = vpop.permute.xlu0 %244
    %246 = vrot.lane.b32.xlu0 %v236, 17
    %v247 = vpop.permute.xlu0 %246
    %vm248 = vcmp.lt.s32.totalorder %v99, 17
    %v249 = vsel %vm248, %v245, %v247
    %v250 = vsel %vm248, %v247, %v245
    %v251 = vmul.f32 %v250, %v141
    %v252 = vmul.f32 %v249, %v142
    %v253 = vmul.f32 %v251, %v129
    %v254 = vmul.f32 %v252, %v130
    %v257 = vrot.slane %v253, 4
    %v258 = vrot.slane %v254, 4
    %v261 = vadd.f32 %v234, %v257
    %v262 = vadd.f32 %v236, %v258
    %v265 = vrot.slane %v234, 1
    %v266 = vrot.slane %v236, 1
    %269 = vrot.lane.b32.xlu0 %v265, 16
    %v270 = vpop.permute.xlu0 %269
    %271 = vrot.lane.b32.xlu0 %v266, 16
    %v272 = vpop.permute.xlu0 %271
    %vm273 = vcmp.lt.s32.totalorder %v99, 16
    %v274 = vsel %vm273, %v270, %v272
    %v275 = vsel %vm273, %v272, %v270
    %v276 = vmul.f32 %v275, %v141
    %v277 = vmul.f32 %v274, %v142
    %v280 = vrot.slane %v276, 4
    %v281 = vrot.slane %v277, 4
    %v284 = vadd.f32 %v261, %v280
    %v285 = vadd.f32 %v262, %v281
    %v286 = vrot.slane %v234, 2
    %v287 = vrot.slane %v236, 2
    %290 = vrot.lane.b32.xlu0 %v286, 15
    %v291 = vpop.permute.xlu0 %290
    %292 = vrot.lane.b32.xlu0 %v287, 15
    %v293 = vpop.permute.xlu0 %292
    %vm294 = vcmp.lt.s32.totalorder %v99, 15
    %v295 = vsel %vm294, %v291, %v293
    %v296 = vsel %vm294, %v293, %v291
    %v297 = vmul.f32 %v296, %v141
    %v298 = vmul.f32 %v295, %v142
    %v299 = vmul.f32 %v297, %v135
    %v300 = vmul.f32 %v298, %v136
    %v303 = vrot.slane %v299, 4
    %v304 = vrot.slane %v300, 4
    %v307 = vadd.f32 %v284, %v303
    %v308 = vadd.f32 %v285, %v304
    %v309 = vrot.slane %v234, 3
    %v310 = vrot.slane %v236, 3
    %313 = vrot.lane.b32.xlu0 %v309, 1
    %v314 = vpop.permute.xlu0 %313
    %315 = vrot.lane.b32.xlu0 %v310, 1
    %v316 = vpop.permute.xlu0 %315
    %vm317 = vcmp.lt.s32.totalorder %v99, 1
    %v318 = vsel %vm317, %v314, %v316
    %v319 = vsel %vm317, %v316, %v314
    %v320 = vmul.f32 %v319, %v129
    %v321 = vmul.f32 %v318, %v130
    %v324 = vrot.slane %v320, 4
    %v325 = vrot.slane %v321, 4
    %v328 = vadd.f32 %v307, %v324
    %v329 = vadd.f32 %v308, %v325
    %v330 = vrot.slane %v234, 5
    %v331 = vrot.slane %v236, 5
    %334 = vrot.lane.b32.xlu0 %v330, 127
    %v335 = vpop.permute.xlu0 %334
    %336 = vrot.lane.b32.xlu0 %v331, 127
    %v337 = vpop.permute.xlu0 %336
    %vm338 = vcmp.lt.s32.totalorder %v99, 127
    %v339 = vsel %vm338, %v335, %v337
    %v340 = vsel %vm338, %v337, %v335
    %v341 = vmul.f32 %v339, %v135
    %v342 = vmul.f32 %v340, %v136
    %v345 = vrot.slane %v341, 4
    %v346 = vrot.slane %v342, 4
    %v349 = vadd.f32 %v328, %v345
    %v350 = vadd.f32 %v329, %v346
    %v351 = vrot.slane %v234, 6
    %v352 = vrot.slane %v236, 6
    %355 = vrot.lane.b32.xlu0 %v351, 113
    %v356 = vpop.permute.xlu0 %355
    %357 = vrot.lane.b32.xlu0 %v352, 113
    %v358 = vpop.permute.xlu0 %357
    %vm359 = vcmp.lt.s32.totalorder %v99, 113
    %v360 = vsel %vm359, %v356, %v358
    %v361 = vsel %vm359, %v358, %v356
    %v362 = vmul.f32 %v360, %v147
    %v363 = vmul.f32 %v361, %v148
    %v364 = vmul.f32 %v362, %v129
    %v365 = vmul.f32 %v363, %v130
    %v368 = vrot.slane %v364, 4
    %v369 = vrot.slane %v365, 4
    %v372 = vadd.f32 %v349, %v368
    %v373 = vadd.f32 %v350, %v369
    %v374 = vrot.slane %v234, 7
    %v375 = vrot.slane %v236, 7
    %378 = vrot.lane.b32.xlu0 %v374, 112
    %v379 = vpop.permute.xlu0 %378
    %380 = vrot.lane.b32.xlu0 %v375, 112
    %v381 = vpop.permute.xlu0 %380
    %vm382 = vcmp.lt.s32.totalorder %v99, 112
    %v383 = vsel %vm382, %v379, %v381
    %v384 = vsel %vm382, %v381, %v379
    %v385 = vmul.f32 %v383, %v147
    %v386 = vmul.f32 %v384, %v148
    %v389 = vrot.slane %v385, 4
    %v390 = vrot.slane %v386, 4
    %v393 = vadd.f32 %v372, %v389
    %v394 = vadd.f32 %v373, %v390
    %395 = vrot.lane.b32.xlu0 %v240, 111
    %v396 = vpop.permute.xlu0 %395
    %397 = vrot.lane.b32.xlu0 %v242, 111
    %v398 = vpop.permute.xlu0 %397
    %vm399 = vcmp.lt.s32.totalorder %v99, 111
    %v400 = vsel %vm399, %v396, %v398
    %v401 = vsel %vm399, %v398, %v396
    %v402 = vmul.f32 %v400, %v147
    %v403 = vmul.f32 %v401, %v148
    %v404 = vmul.f32 %v402, %v135
    %v405 = vmul.f32 %v403, %v136
    %v408 = vrot.slane %v404, 4
    %v409 = vrot.slane %v405, 4
    %v412 = vadd.f32 %v393, %v408
    %v413 = vadd.f32 %v394, %v409
    %s414 = scalar_lea.vmem [#allocation2], 64
    %v415 = vld [vmem:[%s414] sm:$0xff]
    %v416 = vld [vmem:[%s414 + $0x8] sm:$0xff]
    %v417 = vld [vmem:[%s414 + $0x10] sm:$0xff]
    %v418 = vld [vmem:[%s414 + $0x18] sm:$0xff]
    %v419 = vld [vmem:[%s414 + $0x20] sm:$0xff]
    %v420 = vld [vmem:[%s414 + $0x28] sm:$0xff]
    %v421 = vld [vmem:[%s414 + $0x30] sm:$0xff]
    %v422 = vld [vmem:[%s414 + $0x38] sm:$0xff]
    %423 = vmatprep.subr.mxu0 %v416
    %424 = vmatpush1.msra.mxu0 %v415
    %425 = vmatprep.subr.mxu0 %v418
    %426 = vmatpush1.msra.mxu0 %v417
    %427 = vmatprep.subr.mxu0 %v420
    %428 = vmatpush1.msra.mxu0 %v419
    %429 = vmatprep.subr.mxu0 %v422
    %430 = vmatpush1.msra.mxu0 %v421
    %431 = vmatprep.subr.mxu0 0.0
    %432 = vmatpush1.msra.mxu0 0.0
    %433 = vmatprep.subr.mxu0 0.0
    %434 = vmatpush1.msra.mxu0 0.0
    %435 = vmatprep.subr.mxu0 0.0
    %436 = vmatpush1.msra.mxu0 0.0
    %437 = vmatprep.subr.mxu0 0.0
    %438 = vmatpush1.msra.mxu0 0.0
    %439 = vmatprep.subr.mxu0 0.0
    %440 = vmatpush1.msra.mxu0 0.0
    %441 = vmatprep.subr.mxu0 0.0
    %442 = vmatpush1.msra.mxu0 0.0
    %443 = vmatprep.subr.mxu0 0.0
    %444 = vmatpush1.msra.mxu0 0.0
    %445 = vmatprep.subr.mxu0 0.0
    %446 = vmatpush1.msra.mxu0 0.0
    %447 = vmatprep.subr.mxu0 0.0
    %448 = vmatpush1.msra.mxu0 0.0
    %449 = vmatprep.subr.mxu0 0.0
    %450 = vmatpush1.msra.mxu0 0.0
    %451 = vmatprep.subr.mxu0 0.0
    %452 = vmatpush1.msra.mxu0 0.0
    %453 = vmatprep.subr.mxu0 0.0
    %454 = vmatpush1.msra.mxu0 0.0
    %455 = vmatprep.subr.mxu0 0.0
    %456 = vmatpush1.msra.mxu0 0.0
    %457 = vmatprep.subr.mxu0 0.0
    %458 = vmatpush1.msra.mxu0 0.0
    %459 = vmatprep.subr.mxu0 0.0
    %460 = vmatpush1.msra.mxu0 0.0
    %461 = vmatprep.subr.mxu0 0.0
    %462 = vmatpush1.msra.mxu0 0.0
    %463 = vmatprep.subr.mxu0 0.0
    %464 = vmatpush1.msra.mxu0 0.0
    %465 = vmatprep.subr.mxu0 0.0
    %466 = vmatpush1.msra.mxu0 0.0
    %467 = vmatprep.subr.mxu0 0.0
    %468 = vmatpush1.msra.mxu0 0.0
    %469 = vmatprep.subr.mxu0 0.0
    %470 = vmatpush1.msra.mxu0 0.0
    %471 = vmatprep.subr.mxu0 0.0
    %472 = vmatpush1.msra.mxu0 0.0
    %473 = vmatprep.subr.mxu0 0.0
    %474 = vmatpush1.msra.mxu0 0.0
    %475 = vmatprep.subr.mxu0 0.0
    %476 = vmatpush1.msra.mxu0 0.0
    %477 = vmatprep.subr.mxu0 0.0
    %478 = vmatpush1.msra.mxu0 0.0
    %479 = vmatprep.subr.mxu0 0.0
    %480 = vmatpush1.msra.mxu0 0.0
    %481 = vmatprep.subr.mxu0 0.0
    %482 = vmatpush1.msra.mxu0 0.0
    %483 = vmatprep.subr.mxu0 0.0
    %484 = vmatpush1.msra.mxu0 0.0
    %485 = vmatprep.subr.mxu0 0.0
    %486 = vmatpush1.msra.mxu0 0.0
    %487 = vmatprep.mubr.f32.mxu0 0.0
    %488 = vmatmul.mubr.f32.gmra.mrb[0].mxu0 %v162
    %v489 = vpop.f32.mrb[0].mxu0
    %v490 = vadd.f32 0.0, %v489
    %v491 = vpop.f32.mrb[0].mxu0
    %v492 = vadd.f32 0.0, %v491
    %493 = vmatprep.mubr.f32.mxu0 0.0
    %494 = vmatmul.mubr.f32.gmra.mrb[0].mxu0 %v165
    %v495 = vpop.f32.mrb[0].mxu0
    %v496 = vadd.f32 0.0, %v495
    %v497 = vpop.f32.mrb[0].mxu0
    %v498 = vadd.f32 0.0, %v497
    %499 = vdwg.mxu0
    %500 = vrot.lane.b32.xlu0 %v490, 17
    %v501 = vpop.permute.xlu0 %500
    %502 = vrot.lane.b32.xlu0 %v492, 17
    %v503 = vpop.permute.xlu0 %502
    %v504 = vsel %vm248, %v501, %v503
    %v505 = vsel %vm248, %v503, %v501
    %v506 = vmul.f32 %v505, %v141
    %v507 = vmul.f32 %v504, %v142
    %v508 = vmul.f32 %v506, %v129
    %v509 = vmul.f32 %v507, %v130
    %v512 = vrot.slane %v508, 4
    %v513 = vrot.slane %v509, 4
    %v516 = vadd.f32 %v490, %v512
    %v517 = vadd.f32 %v492, %v513
    %v520 = vrot.slane %v490, 1
    %v521 = vrot.slane %v492, 1
    %524 = vrot.lane.b32.xlu0 %v520, 16
    %v525 = vpop.permute.xlu0 %524
    %526 = vrot.lane.b32.xlu0 %v521, 16
    %v527 = vpop.permute.xlu0 %526
    %v528 = vsel %vm273, %v525, %v527
    %v529 = vsel %vm273, %v527, %v525
    %v530 = vmul.f32 %v529, %v141
    %v531 = vmul.f32 %v528, %v142
    %v534 = vrot.slane %v530, 4
    %v535 = vrot.slane %v531, 4
    %v538 = vadd.f32 %v516, %v534
    %v539 = vadd.f32 %v517, %v535
    %v540 = vrot.slane %v490, 2
    %v541 = vrot.slane %v492, 2
    %544 = vrot.lane.b32.xlu0 %v540, 15
    %v545 = vpop.permute.xlu0 %544
    %546 = vrot.lane.b32.xlu0 %v541, 15
    %v547 = vpop.permute.xlu0 %546
    %v548 = vsel %vm294, %v545, %v547
    %v549 = vsel %vm294, %v547, %v545
    %v550 = vmul.f32 %v549, %v141
    %v551 = vmul.f32 %v548, %v142
    %v552 = vmul.f32 %v550, %v135
    %v553 = vmul.f32 %v551, %v136
    %v556 = vrot.slane %v552, 4
    %v557 = vrot.slane %v553, 4
    %v560 = vadd.f32 %v538, %v556
    %v561 = vadd.f32 %v539, %v557
    %v562 = vrot.slane %v490, 3
    %v563 = vrot.slane %v492, 3
    %566 = vrot.lane.b32.xlu0 %v562, 1
    %v567 = vpop.permute.xlu0 %566
    %568 = vrot.lane.b32.xlu0 %v563, 1
    %v569 = vpop.permute.xlu0 %568
    %v570 = vsel %vm317, %v567, %v569
    %v571 = vsel %vm317, %v569, %v567
    %v572 = vmul.f32 %v571, %v129
    %v573 = vmul.f32 %v570, %v130
    %v576 = vrot.slane %v572, 4
    %v577 = vrot.slane %v573, 4
    %v580 = vadd.f32 %v560, %v576
    %v581 = vadd.f32 %v561, %v577
    %v582 = vrot.slane %v490, 5
    %v583 = vrot.slane %v492, 5
    %586 = vrot.lane.b32.xlu0 %v582, 127
    %v587 = vpop.permute.xlu0 %586
    %588 = vrot.lane.b32.xlu0 %v583, 127
    %v589 = vpop.permute.xlu0 %588
    %v590 = vsel %vm338, %v587, %v589
    %v591 = vsel %vm338, %v589, %v587
    %v592 = vmul.f32 %v590, %v135
    %v593 = vmul.f32 %v591, %v136
    %v596 = vrot.slane %v592, 4
    %v597 = vrot.slane %v593, 4
    %v600 = vadd.f32 %v580, %v596
    %v601 = vadd.f32 %v581, %v597
    %v602 = vrot.slane %v490, 6
    %v603 = vrot.slane %v492, 6
    %606 = vrot.lane.b32.xlu0 %v602, 113
    %v607 = vpop.permute.xlu0 %606
    %608 = vrot.lane.b32.xlu0 %v603, 113
    %v609 = vpop.permute.xlu0 %608
    %v610 = vsel %vm359, %v607, %v609
    %v611 = vsel %vm359, %v609, %v607
    %v612 = vmul.f32 %v610, %v147
    %v613 = vmul.f32 %v611, %v148
    %v614 = vmul.f32 %v612, %v129
    %v615 = vmul.f32 %v613, %v130
    %v618 = vrot.slane %v614, 4
    %v619 = vrot.slane %v615, 4
    %v622 = vadd.f32 %v600, %v618
    %v623 = vadd.f32 %v601, %v619
    %v624 = vrot.slane %v490, 7
    %v625 = vrot.slane %v492, 7
    %628 = vrot.lane.b32.xlu0 %v624, 112
    %v629 = vpop.permute.xlu0 %628
    %630 = vrot.lane.b32.xlu0 %v625, 112
    %v631 = vpop.permute.xlu0 %630
    %v632 = vsel %vm382, %v629, %v631
    %v633 = vsel %vm382, %v631, %v629
    %v634 = vmul.f32 %v632, %v147
    %v635 = vmul.f32 %v633, %v148
    %v638 = vrot.slane %v634, 4
    %v639 = vrot.slane %v635, 4
    %v642 = vadd.f32 %v622, %v638
    %v643 = vadd.f32 %v623, %v639
    %644 = vrot.lane.b32.xlu0 %v496, 111
    %v645 = vpop.permute.xlu0 %644
    %646 = vrot.lane.b32.xlu0 %v498, 111
    %v647 = vpop.permute.xlu0 %646
    %v648 = vsel %vm399, %v645, %v647
    %v649 = vsel %vm399, %v647, %v645
    %v650 = vmul.f32 %v648, %v147
    %v651 = vmul.f32 %v649, %v148
    %v652 = vmul.f32 %v650, %v135
    %v653 = vmul.f32 %v651, %v136
    %v656 = vrot.slane %v652, 4
    %v657 = vrot.slane %v653, 4
    %v660 = vadd.f32 %v642, %v656
    %v661 = vadd.f32 %v643, %v657
    %v664 = vrot.slane %v412, 4
    %v665 = vrot.slane %v413, 4
    %v670 = vrot.slane %v660, 3
    %v671 = vrot.slane %v661, 3
    %vm674 = vcmask 1040384
    %v675 = vsel %vm674, %v664, %v670
    %v676 = vsel %vm674, %v665, %v671
    %v677 = vstv %s151
    %v678 = vadd.f32 %v675, %v677
    %v679 = vadd.f32 %v676, %v677
    %v680 = vxor.u32 %v678, 2147483648
    %v681 = vxor.u32 %v679, 2147483648
    %v682 = vmul.f32 %v680, 1.442695
    %v683 = vpow.pop %v682
    %v684 = vmul.f32 %v681, 1.442695
    %v685 = vpow.pop %v684
    %v686 = vadd.f32 %v683, 1.0
    %v687 = vadd.f32 %v685, 1.0
    %v688 = vrcp.pop %v686
    %v689 = vmul.f32 1.0, %v688
    %v690 = vrcp.pop %v687
    %v691 = vmul.f32 1.0, %v690
    %v694 = vcombine.low %v689, %v691
    %v696 = vunpack.c.l.s4 1983009808
    %v697 = vunpack.c.0.s8 %v696
    %v698 = vlaneseq
    %v699 = vshrl.u32 %v698, 7
    %v700 = vsub.s32 %v697, %v699
    %v701 = vrot.slane %v694, %v700
    %703 = vst [vmem:[#allocation12] sm:$0xf] %v701
    %s704 = scalar_lea.vmem %s4, 16
    %v705 = vld [vmem:[%s704] sm:$0xff]
    %v706 = vld [vmem:[%s704 + $0x8] sm:$0x1]
    %s707 = sld [smem:[#allocation11 + $0x1]]
    %v708 = vld [vmem:[#allocation6] sm:$0xff]
    %v709 = vld [vmem:[#allocation6 + $0x8] sm:$0xff]
    %v710 = vld [vmem:[#allocation6 + $0x10] sm:$0xff]
    %v711 = vld [vmem:[#allocation6 + $0x18] sm:$0xff]
    %v712 = vld [vmem:[#allocation6 + $0x20] sm:$0xff]
    %v713 = vld [vmem:[#allocation6 + $0x28] sm:$0xff]
    %v714 = vld [vmem:[#allocation6 + $0x30] sm:$0xff]
    %v715 = vld [vmem:[#allocation6 + $0x38] sm:$0xff]
    %v717 = vsel %vm160, %v705, 0
    %v720 = vsel %vm160, %v706, 0
    %722 = vmatprep.subr.mxu0 %v709
    %723 = vmatpush1.msra.mxu0 %v708
    %724 = vmatprep.subr.mxu0 %v711
    %725 = vmatpush1.msra.mxu0 %v710
    %726 = vmatprep.subr.mxu0 %v713
    %727 = vmatpush1.msra.mxu0 %v712
    %728 = vmatprep.subr.mxu0 %v715
    %729 = vmatpush1.msra.mxu0 %v714
    %730 = vmatprep.subr.mxu0 0.0
    %731 = vmatpush1.msra.mxu0 0.0
    %732 = vmatprep.subr.mxu0 0.0
    %733 = vmatpush1.msra.mxu0 0.0
    %734 = vmatprep.subr.mxu0 0.0
    %735 = vmatpush1.msra.mxu0 0.0
    %736 = vmatprep.subr.mxu0 0.0
    %737 = vmatpush1.msra.mxu0 0.0
    %738 = vmatprep.subr.mxu0 0.0
    %739 = vmatpush1.msra.mxu0 0.0
    %740 = vmatprep.subr.mxu0 0.0
    %741 = vmatpush1.msra.mxu0 0.0
    %742 = vmatprep.subr.mxu0 0.0
    %743 = vmatpush1.msra.mxu0 0.0
    %744 = vmatprep.subr.mxu0 0.0
    %745 = vmatpush1.msra.mxu0 0.0
    %746 = vmatprep.subr.mxu0 0.0
    %747 = vmatpush1.msra.mxu0 0.0
    %748 = vmatprep.subr.mxu0 0.0
    %749 = vmatpush1.msra.mxu0 0.0
    %750 = vmatprep.subr.mxu0 0.0
    %751 = vmatpush1.msra.mxu0 0.0
    %752 = vmatprep.subr.mxu0 0.0
    %753 = vmatpush1.msra.mxu0 0.0
    %754 = vmatprep.subr.mxu0 0.0
    %755 = vmatpush1.msra.mxu0 0.0
    %756 = vmatprep.subr.mxu0 0.0
    %757 = vmatpush1.msra.mxu0 0.0
    %758 = vmatprep.subr.mxu0 0.0
    %759 = vmatpush1.msra.mxu0 0.0
    %760 = vmatprep.subr.mxu0 0.0
    %761 = vmatpush1.msra.mxu0 0.0
    %762 = vmatprep.subr.mxu0 0.0
    %763 = vmatpush1.msra.mxu0 0.0
    %764 = vmatprep.subr.mxu0 0.0
    %765 = vmatpush1.msra.mxu0 0.0
    %766 = vmatprep.subr.mxu0 0.0
    %767 = vmatpush1.msra.mxu0 0.0
    %768 = vmatprep.subr.mxu0 0.0
    %769 = vmatpush1.msra.mxu0 0.0
    %770 = vmatprep.subr.mxu0 0.0
    %771 = vmatpush1.msra.mxu0 0.0
    %772 = vmatprep.subr.mxu0 0.0
    %773 = vmatpush1.msra.mxu0 0.0
    %774 = vmatprep.subr.mxu0 0.0
    %775 = vmatpush1.msra.mxu0 0.0
    %776 = vmatprep.subr.mxu0 0.0
    %777 = vmatpush1.msra.mxu0 0.0
    %778 = vmatprep.subr.mxu0 0.0
    %779 = vmatpush1.msra.mxu0 0.0
    %780 = vmatprep.subr.mxu0 0.0
    %781 = vmatpush1.msra.mxu0 0.0
    %782 = vmatprep.subr.mxu0 0.0
    %783 = vmatpush1.msra.mxu0 0.0
    %784 = vmatprep.subr.mxu0 0.0
    %785 = vmatpush1.msra.mxu0 0.0
    %786 = vmatprep.mubr.f32.mxu0 0.0
    %787 = vmatmul.mubr.f32.gmra.mrb[0].mxu0 %v717
    %v788 = vpop.f32.mrb[0].mxu0
    %v789 = vadd.f32 0.0, %v788
    %v790 = vpop.f32.mrb[0].mxu0
    %v791 = vadd.f32 0.0, %v790
    %792 = vmatprep.mubr.f32.mxu0 0.0
    %793 = vmatmul.mubr.f32.gmra.mrb[0].mxu0 %v720
    %v794 = vpop.f32.mrb[0].mxu0
    %v795 = vadd.f32 0.0, %v794
    %v796 = vpop.f32.mrb[0].mxu0
    %v797 = vadd.f32 0.0, %v796
    %798 = vdwg.mxu0
    %799 = vrot.lane.b32.xlu0 %v789, 17
    %v800 = vpop.permute.xlu0 %799
    %801 = vrot.lane.b32.xlu0 %v791, 17
    %v802 = vpop.permute.xlu0 %801
    %v803 = vsel %vm248, %v800, %v802
    %v804 = vsel %vm248, %v802, %v800
    %v805 = vmul.f32 %v804, %v141
    %v806 = vmul.f32 %v803, %v142
    %v807 = vmul.f32 %v805, %v129
    %v808 = vmul.f32 %v806, %v130
    %v811 = vrot.slane %v807, 4
    %v812 = vrot.slane %v808, 4
    %v815 = vadd.f32 %v789, %v811
    %v816 = vadd.f32 %v791, %v812
    %v819 = vrot.slane %v789, 1
    %v820 = vrot.slane %v791, 1
    %823 = vrot.lane.b32.xlu0 %v819, 16
    %v824 = vpop.permute.xlu0 %823
    %825 = vrot.lane.b32.xlu0 %v820, 16
    %v826 = vpop.permute.xlu0 %825
    %v827 = vsel %vm273, %v824, %v826
    %v828 = vsel %vm273, %v826, %v824
    %v829 = vmul.f32 %v828, %v141
    %v830 = vmul.f32 %v827, %v142
    %v833 = vrot.slane %v829, 4
    %v834 = vrot.slane %v830, 4
    %v837 = vadd.f32 %v815, %v833
    %v838 = vadd.f32 %v816, %v834
    %v839 = vrot.slane %v789, 2
    %v840 = vrot.slane %v791, 2
    %843 = vrot.lane.b32.xlu0 %v839, 15
    %v844 = vpop.permute.xlu0 %843
    %845 = vrot.lane.b32.xlu0 %v840, 15
    %v846 = vpop.permute.xlu0 %845
    %v847 = vsel %vm294, %v844, %v846
    %v848 = vsel %vm294, %v846, %v844
    %v849 = vmul.f32 %v848, %v141
    %v850 = vmul.f32 %v847, %v142
    %v851 = vmul.f32 %v849, %v135
    %v852 = vmul.f32 %v850, %v136
    %v855 = vrot.slane %v851, 4
    %v856 = vrot.slane %v852, 4
    %v859 = vadd.f32 %v837, %v855
    %v860 = vadd.f32 %v838, %v856
    %v861 = vrot.slane %v789, 3
    %v862 = vrot.slane %v791, 3
    %865 = vrot.lane.b32.xlu0 %v861, 1
    %v866 = vpop.permute.xlu0 %865
    %867 = vrot.lane.b32.xlu0 %v862, 1
    %v868 = vpop.permute.xlu0 %867
    %v869 = vsel %vm317, %v866, %v868
    %v870 = vsel %vm317, %v868, %v866
    %v871 = vmul.f32 %v870, %v129
    %v872 = vmul.f32 %v869, %v130
    %v875 = vrot.slane %v871, 4
    %v876 = vrot.slane %v872, 4
    %v879 = vadd.f32 %v859, %v875
    %v880 = vadd.f32 %v860, %v876
    %v881 = vrot.slane %v789, 5
    %v882 = vrot.slane %v791, 5
    %885 = vrot.lane.b32.xlu0 %v881, 127
    %v886 = vpop.permute.xlu0 %885
    %887 = vrot.lane.b32.xlu0 %v882, 127
    %v888 = vpop.permute.xlu0 %887
    %v889 = vsel %vm338, %v886, %v888
    %v890 = vsel %vm338, %v888, %v886
    %v891 = vmul.f32 %v889, %v135
    %v892 = vmul.f32 %v890, %v136
    %v895 = vrot.slane %v891, 4
    %v896 = vrot.slane %v892, 4
    %v899 = vadd.f32 %v879, %v895
    %v900 = vadd.f32 %v880, %v896
    %v901 = vrot.slane %v789, 6
    %v902 = vrot.slane %v791, 6
    %905 = vrot.lane.b32.xlu0 %v901, 113
    %v906 = vpop.permute.xlu0 %905
    %907 = vrot.lane.b32.xlu0 %v902, 113
    %v908 = vpop.permute.xlu0 %907
    %v909 = vsel %vm359, %v906, %v908
    %v910 = vsel %vm359, %v908, %v906
    %v911 = vmul.f32 %v909, %v147
    %v912 = vmul.f32 %v910, %v148
    %v913 = vmul.f32 %v911, %v129
    %v914 = vmul.f32 %v912, %v130
    %v917 = vrot.slane %v913, 4
    %v918 = vrot.slane %v914, 4
    %v921 = vadd.f32 %v899, %v917
    %v922 = vadd.f32 %v900, %v918
    %v923 = vrot.slane %v789, 7
    %v924 = vrot.slane %v791, 7
    %927 = vrot.lane.b32.xlu0 %v923, 112
    %v928 = vpop.permute.xlu0 %927
    %929 = vrot.lane.b32.xlu0 %v924, 112
    %v930 = vpop.permute.xlu0 %929
    %v931 = vsel %vm382, %v928, %v930
    %v932 = vsel %vm382, %v930, %v928
    %v933 = vmul.f32 %v931, %v147
    %v934 = vmul.f32 %v932, %v148
    %v937 = vrot.slane %v933, 4
    %v938 = vrot.slane %v934, 4
    %v941 = vadd.f32 %v921, %v937
    %v942 = vadd.f32 %v922, %v938
    %943 = vrot.lane.b32.xlu0 %v795, 111
    %v944 = vpop.permute.xlu0 %943
    %945 = vrot.lane.b32.xlu0 %v797, 111
    %v946 = vpop.permute.xlu0 %945
    %v947 = vsel %vm399, %v944, %v946
    %v948 = vsel %vm399, %v946, %v944
    %v949 = vmul.f32 %v947, %v147
    %v950 = vmul.f32 %v948, %v148
    %v951 = vmul.f32 %v949, %v135
    %v952 = vmul.f32 %v950, %v136
    %v955 = vrot.slane %v951, 4
    %v956 = vrot.slane %v952, 4
    %v959 = vadd.f32 %v941, %v955
    %v960 = vadd.f32 %v942, %v956
    %s961 = scalar_lea.vmem [#allocation6], 64
    %v962 = vld [vmem:[%s961] sm:$0xff]
    %v963 = vld [vmem:[%s961 + $0x8] sm:$0xff]
    %v964 = vld [vmem:[%s961 + $0x10] sm:$0xff]
    %v965 = vld [vmem:[%s961 + $0x18] sm:$0xff]
    %v966 = vld [vmem:[%s961 + $0x20] sm:$0xff]
    %v967 = vld [vmem:[%s961 + $0x28] sm:$0xff]
    %v968 = vld [vmem:[%s961 + $0x30] sm:$0xff]
    %v969 = vld [vmem:[%s961 + $0x38] sm:$0xff]
    %970 = vmatprep.subr.mxu0 %v963
    %971 = vmatpush1.msra.mxu0 %v962
    %972 = vmatprep.subr.mxu0 %v965
    %973 = vmatpush1.msra.mxu0 %v964
    %974 = vmatprep.subr.mxu0 %v967
    %975 = vmatpush1.msra.mxu0 %v966
    %976 = vmatprep.subr.mxu0 %v969
    %977 = vmatpush1.msra.mxu0 %v968
    %978 = vmatprep.subr.mxu0 0.0
    %979 = vmatpush1.msra.mxu0 0.0
    %980 = vmatprep.subr.mxu0 0.0
    %981 = vmatpush1.msra.mxu0 0.0
    %982 = vmatprep.subr.mxu0 0.0
    %983 = vmatpush1.msra.mxu0 0.0
    %984 = vmatprep.subr.mxu0 0.0
    %985 = vmatpush1.msra.mxu0 0.0
    %986 = vmatprep.subr.mxu0 0.0
    %987 = vmatpush1.msra.mxu0 0.0
    %988 = vmatprep.subr.mxu0 0.0
    %989 = vmatpush1.msra.mxu0 0.0
    %990 = vmatprep.subr.mxu0 0.0
    %991 = vmatpush1.msra.mxu0 0.0
    %992 = vmatprep.subr.mxu0 0.0
    %993 = vmatpush1.msra.mxu0 0.0
    %994 = vmatprep.subr.mxu0 0.0
    %995 = vmatpush1.msra.mxu0 0.0
    %996 = vmatprep.subr.mxu0 0.0
    %997 = vmatpush1.msra.mxu0 0.0
    %998 = vmatprep.subr.mxu0 0.0
    %999 = vmatpush1.msra.mxu0 0.0
    %1000 = vmatprep.subr.mxu0 0.0
    %1001 = vmatpush1.msra.mxu0 0.0
    %1002 = vmatprep.subr.mxu0 0.0
    %1003 = vmatpush1.msra.mxu0 0.0
    %1004 = vmatprep.subr.mxu0 0.0
    %1005 = vmatpush1.msra.mxu0 0.0
    %1006 = vmatprep.subr.mxu0 0.0
    %1007 = vmatpush1.msra.mxu0 0.0
    %1008 = vmatprep.subr.mxu0 0.0
    %1009 = vmatpush1.msra.mxu0 0.0
    %1010 = vmatprep.subr.mxu0 0.0
    %1011 = vmatpush1.msra.mxu0 0.0
    %1012 = vmatprep.subr.mxu0 0.0
    %1013 = vmatpush1.msra.mxu0 0.0
    %1014 = vmatprep.subr.mxu0 0.0
    %1015 = vmatpush1.msra.mxu0 0.0
    %1016 = vmatprep.subr.mxu0 0.0
    %1017 = vmatpush1.msra.mxu0 0.0
    %1018 = vmatprep.subr.mxu0 0.0
    %1019 = vmatpush1.msra.mxu0 0.0
    %1020 = vmatprep.subr.mxu0 0.0
    %1021 = vmatpush1.msra.mxu0 0.0
    %1022 = vmatprep.subr.mxu0 0.0
    %1023 = vmatpush1.msra.mxu0 0.0
    %1024 = vmatprep.subr.mxu0 0.0
    %1025 = vmatpush1.msra.mxu0 0.0
    %1026 = vmatprep.subr.mxu0 0.0
    %1027 = vmatpush1.msra.mxu0 0.0
    %1028 = vmatprep.subr.mxu0 0.0
    %1029 = vmatpush1.msra.mxu0 0.0
    %1030 = vmatprep.subr.mxu0 0.0
    %1031 = vmatpush1.msra.mxu0 0.0
    %1032 = vmatprep.subr.mxu0 0.0
    %1033 = vmatpush1.msra.mxu0 0.0
    %1034 = vmatprep.mubr.f32.mxu0 0.0
    %1035 = vmatmul.mubr.f32.gmra.mrb[0].mxu0 %v717
    %v1036 = vpop.f32.mrb[0].mxu0
    %v1037 = vadd.f32 0.0, %v1036
    %v1038 = vpop.f32.mrb[0].mxu0
    %v1039 = vadd.f32 0.0, %v1038
    %1040 = vmatprep.mubr.f32.mxu0 0.0
    %1041 = vmatmul.mubr.f32.gmra.mrb[0].mxu0 %v720
    %v1042 = vpop.f32.mrb[0].mxu0
    %v1043 = vadd.f32 0.0, %v1042
    %v1044 = vpop.f32.mrb[0].mxu0
    %v1045 = vadd.f32 0.0, %v1044
    %1046 = vdwg.mxu0
    %1047 = vrot.lane.b32.xlu0 %v1037, 17
    %v1048 = vpop.permute.xlu0 %1047
    %1049 = vrot.lane.b32.xlu0 %v1039, 17
    %v1050 = vpop.permute.xlu0 %1049
    %v1051 = vsel %vm248, %v1048, %v1050
    %v1052 = vsel %vm248, %v1050, %v1048
    %v1053 = vmul.f32 %v1052, %v141
    %v1054 = vmul.f32 %v1051, %v142
    %v1055 = vmul.f32 %v1053, %v129
    %v1056 = vmul.f32 %v1054, %v130
    %v1059 = vrot.slane %v1055, 4
    %v1060 = vrot.slane %v1056, 4
    %v1063 = vadd.f32 %v1037, %v1059
    %v1064 = vadd.f32 %v1039, %v1060
    %v1067 = vrot.slane %v1037, 1
    %v1068 = vrot.slane %v1039, 1
    %1071 = vrot.lane.b32.xlu0 %v1067, 16
    %v1072 = vpop.permute.xlu0 %1071
    %1073 = vrot.lane.b32.xlu0 %v1068, 16
    %v1074 = vpop.permute.xlu0 %1073
    %v1075 = vsel %vm273, %v1072, %v1074
    %v1076 = vsel %vm273, %v1074, %v1072
    %v1077 = vmul.f32 %v1076, %v141
    %v1078 = vmul.f32 %v1075, %v142
    %v1081 = vrot.slane %v1077, 4
    %v1082 = vrot.slane %v1078, 4
    %v1085 = vadd.f32 %v1063, %v1081
    %v1086 = vadd.f32 %v1064, %v1082
    %v1087 = vrot.slane %v1037, 2
    %v1088 = vrot.slane %v1039, 2
    %1091 = vrot.lane.b32.xlu0 %v1087, 15
    %v1092 = vpop.permute.xlu0 %1091
    %1093 = vrot.lane.b32.xlu0 %v1088, 15
    %v1094 = vpop.permute.xlu0 %1093
    %v1095 = vsel %vm294, %v1092, %v1094
    %v1096 = vsel %vm294, %v1094, %v1092
    %v1097 = vmul.f32 %v1096, %v141
    %v1098 = vmul.f32 %v1095, %v142
    %v1099 = vmul.f32 %v1097, %v135
    %v1100 = vmul.f32 %v1098, %v136
    %v1103 = vrot.slane %v1099, 4
    %v1104 = vrot.slane %v1100, 4
    %v1107 = vadd.f32 %v1085, %v1103
    %v1108 = vadd.f32 %v1086, %v1104
    %v1109 = vrot.slane %v1037, 3
    %v1110 = vrot.slane %v1039, 3
    %1113 = vrot.lane.b32.xlu0 %v1109, 1
    %v1114 = vpop.permute.xlu0 %1113
    %1115 = vrot.lane.b32.xlu0 %v1110, 1
    %v1116 = vpop.permute.xlu0 %1115
    %v1117 = vsel %vm317, %v1114, %v1116
    %v1118 = vsel %vm317, %v1116, %v1114
    %v1119 = vmul.f32 %v1118, %v129
    %v1120 = vmul.f32 %v1117, %v130
    %v1123 = vrot.slane %v1119, 4
    %v1124 = vrot.slane %v1120, 4
    %v1127 = vadd.f32 %v1107, %v1123
    %v1128 = vadd.f32 %v1108, %v1124
    %v1129 = vrot.slane %v1037, 5
    %v1130 = vrot.slane %v1039, 5
    %1133 = vrot.lane.b32.xlu0 %v1129, 127
    %v1134 = vpop.permute.xlu0 %1133
    %1135 = vrot.lane.b32.xlu0 %v1130, 127
    %v1136 = vpop.permute.xlu0 %1135
    %v1137 = vsel %vm338, %v1134, %v1136
    %v1138 = vsel %vm338, %v1136, %v1134
    %v1139 = vmul.f32 %v1137, %v135
    %v1140 = vmul.f32 %v1138, %v136
    %v1143 = vrot.slane %v1139, 4
    %v1144 = vrot.slane %v1140, 4
    %v1147 = vadd.f32 %v1127, %v1143
    %v1148 = vadd.f32 %v1128, %v1144
    %v1149 = vrot.slane %v1037, 6
    %v1150 = vrot.slane %v1039, 6
    %1153 = vrot.lane.b32.xlu0 %v1149, 113
    %v1154 = vpop.permute.xlu0 %1153
    %1155 = vrot.lane.b32.xlu0 %v1150, 113
    %v1156 = vpop.permute.xlu0 %1155
    %v1157 = vsel %vm359, %v1154, %v1156
    %v1158 = vsel %vm359, %v1156, %v1154
    %v1159 = vmul.f32 %v1157, %v147
    %v1160 = vmul.f32 %v1158, %v148
    %v1161 = vmul.f32 %v1159, %v129
    %v1162 = vmul.f32 %v1160, %v130
    %v1165 = vrot.slane %v1161, 4
    %v1166 = vrot.slane %v1162, 4
    %v1169 = vadd.f32 %v1147, %v1165
    %v1170 = vadd.f32 %v1148, %v1166
    %v1171 = vrot.slane %v1037, 7
    %v1172 = vrot.slane %v1039, 7
    %1175 = vrot.lane.b32.xlu0 %v1171, 112
    %v1176 = vpop.permute.xlu0 %1175
    %1177 = vrot.lane.b32.xlu0 %v1172, 112
    %v1178 = vpop.permute.xlu0 %1177
    %v1179 = vsel %vm382, %v1176, %v1178
    %v1180 = vsel %vm382, %v1178, %v1176
    %v1181 = vmul.f32 %v1179, %v147
    %v1182 = vmul.f32 %v1180, %v148
    %v1185 = vrot.slane %v1181, 4
    %v1186 = vrot.slane %v1182, 4
    %v1189 = vadd.f32 %v1169, %v1185
    %v1190 = vadd.f32 %v1170, %v1186
    %1191 = vrot.lane.b32.xlu0 %v1043, 111
    %v1192 = vpop.permute.xlu0 %1191
    %1193 = vrot.lane.b32.xlu0 %v1045, 111
    %v1194 = vpop.permute.xlu0 %1193
    %v1195 = vsel %vm399, %v1192, %v1194
    %v1196 = vsel %vm399, %v1194, %v1192
    %v1197 = vmul.f32 %v1195, %v147
    %v1198 = vmul.f32 %v1196, %v148
    %v1199 = vmul.f32 %v1197, %v135
    %v1200 = vmul.f32 %v1198, %v136
    %v1203 = vrot.slane %v1199, 4
    %v1204 = vrot.slane %v1200, 4
    %v1207 = vadd.f32 %v1189, %v1203
    %v1208 = vadd.f32 %v1190, %v1204
    %v1211 = vrot.slane %v959, 4
    %v1212 = vrot.slane %v960, 4
    %v1217 = vrot.slane %v1207, 3
    %v1218 = vrot.slane %v1208, 3
    %v1221 = vsel %vm674, %v1211, %v1217
    %v1222 = vsel %vm674, %v1212, %v1218
    %v1223 = vstv %s707
    %v1224 = vadd.f32 %v1221, %v1223
    %v1225 = vadd.f32 %v1222, %v1223
    %v1226 = vxor.u32 %v1224, 2147483648
    %v1227 = vxor.u32 %v1225, 2147483648
    %v1228 = vmul.f32 %v1226, 1.442695
    %v1229 = vpow.pop %v1228
    %v1230 = vmul.f32 %v1227, 1.442695
    %v1231 = vpow.pop %v1230
    %v1232 = vadd.f32 %v1229, 1.0
    %v1233 = vadd.f32 %v1231, 1.0
    %v1234 = vrcp.pop %v1232
    %v1235 = vmul.f32 1.0, %v1234
    %v1236 = vrcp.pop %v1233
    %v1237 = vmul.f32 1.0, %v1236
    %v1240 = vcombine.low %v1235, %v1237
    %v1242 = vunpack.c.l.s4 1983009808
    %v1243 = vunpack.c.0.s8 %v1242
    %v1244 = vlaneseq
    %v1245 = vshrl.u32 %v1244, 7
    %v1246 = vsub.s32 %v1243, %v1245
    %v1247 = vrot.slane %v1240, %v1246
    %1249 = vst [vmem:[#allocation13] sm:$0xf] %v1247
    %s1250 = scalar_lea.vmem %s4, 32
    %v1251 = vld [vmem:[%s1250] sm:$0xff]
    %v1252 = vld [vmem:[%s1250 + $0x8] sm:$0x1]
    %s1253 = sld [smem:[#allocation11 + $0x2]]
    %v1254 = vld [vmem:[#allocation8] sm:$0xff]
    %v1255 = vld [vmem:[#allocation8 + $0x8] sm:$0xff]
    %v1256 = vld [vmem:[#allocation8 + $0x10] sm:$0xff]
    %v1257 = vld [vmem:[#allocation8 + $0x18] sm:$0xff]
    %v1258 = vld [vmem:[#allocation8 + $0x20] sm:$0xff]
    %v1259 = vld [vmem:[#allocation8 + $0x28] sm:$0xff]
    %v1260 = vld [vmem:[#allocation8 + $0x30] sm:$0xff]
    %v1261 = vld [vmem:[#allocation8 + $0x38] sm:$0xff]
    %v1263 = vsel %vm160, %v1251, 0
    %v1266 = vsel %vm160, %v1252, 0
    %1268 = vmatprep.subr.mxu0 %v1255
    %1269 = vmatpush1.msra.mxu0 %v1254
    %1270 = vmatprep.subr.mxu0 %v1257
    %1271 = vmatpush1.msra.mxu0 %v1256
    %1272 = vmatprep.subr.mxu0 %v1259
    %1273 = vmatpush1.msra.mxu0 %v1258
    %1274 = vmatprep.subr.mxu0 %v1261
    %1275 = vmatpush1.msra.mxu0 %v1260
    %1276 = vmatprep.subr.mxu0 0.0
    %1277 = vmatpush1.msra.mxu0 0.0
    %1278 = vmatprep.subr.mxu0 0.0
    %1279 = vmatpush1.msra.mxu0 0.0
    %1280 = vmatprep.subr.mxu0 0.0
    %1281 = vmatpush1.msra.mxu0 0.0
    %1282 = vmatprep.subr.mxu0 0.0
    %1283 = vmatpush1.msra.mxu0 0.0
    %1284 = vmatprep.subr.mxu0 0.0
    %1285 = vmatpush1.msra.mxu0 0.0
    %1286 = vmatprep.subr.mxu0 0.0
    %1287 = vmatpush1.msra.mxu0 0.0
    %1288 = vmatprep.subr.mxu0 0.0
    %1289 = vmatpush1.msra.mxu0 0.0
    %1290 = vmatprep.subr.mxu0 0.0
    %1291 = vmatpush1.msra.mxu0 0.0
    %1292 = vmatprep.subr.mxu0 0.0
    %1293 = vmatpush1.msra.mxu0 0.0
    %1294 = vmatprep.subr.mxu0 0.0
    %1295 = vmatpush1.msra.mxu0 0.0
    %1296 = vmatprep.subr.mxu0 0.0
    %1297 = vmatpush1.msra.mxu0 0.0
    %1298 = vmatprep.subr.mxu0 0.0
    %1299 = vmatpush1.msra.mxu0 0.0
    %1300 = vmatprep.subr.mxu0 0.0
    %1301 = vmatpush1.msra.mxu0 0.0
    %1302 = vmatprep.subr.mxu0 0.0
    %1303 = vmatpush1.msra.mxu0 0.0
    %1304 = vmatprep.subr.mxu0 0.0
    %1305 = vmatpush1.msra.mxu0 0.0
    %1306 = vmatprep.subr.mxu0 0.0
    %1307 = vmatpush1.msra.mxu0 0.0
    %1308 = vmatprep.subr.mxu0 0.0
    %1309 = vmatpush1.msra.mxu0 0.0
    %1310 = vmatprep.subr.mxu0 0.0
    %1311 = vmatpush1.msra.mxu0 0.0
    %1312 = vmatprep.subr.mxu0 0.0
    %1313 = vmatpush1.msra.mxu0 0.0
    %1314 = vmatprep.subr.mxu0 0.0
    %1315 = vmatpush1.msra.mxu0 0.0
    %1316 = vmatprep.subr.mxu0 0.0
    %1317 = vmatpush1.msra.mxu0 0.0
    %1318 = vmatprep.subr.mxu0 0.0
    %1319 = vmatpush1.msra.mxu0 0.0
    %1320 = vmatprep.subr.mxu0 0.0
    %1321 = vmatpush1.msra.mxu0 0.0
    %1322 = vmatprep.subr.mxu0 0.0
    %1323 = vmatpush1.msra.mxu0 0.0
    %1324 = vmatprep.subr.mxu0 0.0
    %1325 = vmatpush1.msra.mxu0 0.0
    %1326 = vmatprep.subr.mxu0 0.0
    %1327 = vmatpush1.msra.mxu0 0.0
    %1328 = vmatprep.subr.mxu0 0.0
    %1329 = vmatpush1.msra.mxu0 0.0
    %1330 = vmatprep.subr.mxu0 0.0
    %1331 = vmatpush1.msra.mxu0 0.0
    %1332 = vmatprep.mubr.f32.mxu0 0.0
    %1333 = vmatmul.mubr.f32.gmra.mrb[0].mxu0 %v1263
    %v1334 = vpop.f32.mrb[0].mxu0
    %v1335 = vadd.f32 0.0, %v1334
    %v1336 = vpop.f32.mrb[0].mxu0
    %v1337 = vadd.f32 0.0, %v1336
    %1338 = vmatprep.mubr.f32.mxu0 0.0
    %1339 = vmatmul.mubr.f32.gmra.mrb[0].mxu0 %v1266
    %v1340 = vpop.f32.mrb[0].mxu0
    %v1341 = vadd.f32 0.0, %v1340
    %v1342 = vpop.f32.mrb[0].mxu0
    %v1343 = vadd.f32 0.0, %v1342
    %1344 = vdwg.mxu0
    %1345 = vrot.lane.b32.xlu0 %v1335, 17
    %v1346 = vpop.permute.xlu0 %1345
    %1347 = vrot.lane.b32.xlu0 %v1337, 17
    %v1348 = vpop.permute.xlu0 %1347
    %v1349 = vsel %vm248, %v1346, %v1348
    %v1350 = vsel %vm248, %v1348, %v1346
    %v1351 = vmul.f32 %v1350, %v141
    %v1352 = vmul.f32 %v1349, %v142
    %v1353 = vmul.f32 %v1351, %v129
    %v1354 = vmul.f32 %v1352, %v130
    %v1357 = vrot.slane %v1353, 4
    %v1358 = vrot.slane %v1354, 4
    %v1361 = vadd.f32 %v1335, %v1357
    %v1362 = vadd.f32 %v1337, %v1358
    %v1365 = vrot.slane %v1335, 1
    %v1366 = vrot.slane %v1337, 1
    %1369 = vrot.lane.b32.xlu0 %v1365, 16
    %v1370 = vpop.permute.xlu0 %1369
    %1371 = vrot.lane.b32.xlu0 %v1366, 16
    %v1372 = vpop.permute.xlu0 %1371
    %v1373 = vsel %vm273, %v1370, %v1372
    %v1374 = vsel %vm273, %v1372, %v1370
    %v1375 = vmul.f32 %v1374, %v141
    %v1376 = vmul.f32 %v1373, %v142
    %v1379 = vrot.slane %v1375, 4
    %v1380 = vrot.slane %v1376, 4
    %v1383 = vadd.f32 %v1361, %v1379
    %v1384 = vadd.f32 %v1362, %v1380
    %v1385 = vrot.slane %v1335, 2
    %v1386 = vrot.slane %v1337, 2
    %1389 = vrot.lane.b32.xlu0 %v1385, 15
    %v1390 = vpop.permute.xlu0 %1389
    %1391 = vrot.lane.b32.xlu0 %v1386, 15
    %v1392 = vpop.permute.xlu0 %1391
    %v1393 = vsel %vm294, %v1390, %v1392
    %v1394 = vsel %vm294, %v1392, %v1390
    %v1395 = vmul.f32 %v1394, %v141
    %v1396 = vmul.f32 %v1393, %v142
    %v1397 = vmul.f32 %v1395, %v135
    %v1398 = vmul.f32 %v1396, %v136
    %v1401 = vrot.slane %v1397, 4
    %v1402 = vrot.slane %v1398, 4
    %v1405 = vadd.f32 %v1383, %v1401
    %v1406 = vadd.f32 %v1384, %v1402
    %v1407 = vrot.slane %v1335, 3
    %v1408 = vrot.slane %v1337, 3
    %1411 = vrot.lane.b32.xlu0 %v1407, 1
    %v1412 = vpop.permute.xlu0 %1411
    %1413 = vrot.lane.b32.xlu0 %v1408, 1
    %v1414 = vpop.permute.xlu0 %1413
    %v1415 = vsel %vm317, %v1412, %v1414
    %v1416 = vsel %vm317, %v1414, %v1412
    %v1417 = vmul.f32 %v1416, %v129
    %v1418 = vmul.f32 %v1415, %v130
    %v1421 = vrot.slane %v1417, 4
    %v1422 = vrot.slane %v1418, 4
    %v1425 = vadd.f32 %v1405, %v1421
    %v1426 = vadd.f32 %v1406, %v1422
    %v1427 = vrot.slane %v1335, 5
    %v1428 = vrot.slane %v1337, 5
    %1431 = vrot.lane.b32.xlu0 %v1427, 127
    %v1432 = vpop.permute.xlu0 %1431
    %1433 = vrot.lane.b32.xlu0 %v1428, 127
    %v1434 = vpop.permute.xlu0 %1433
    %v1435 = vsel %vm338, %v1432, %v1434
    %v1436 = vsel %vm338, %v1434, %v1432
    %v1437 = vmul.f32 %v1435, %v135
    %v1438 = vmul.f32 %v1436, %v136
    %v1441 = vrot.slane %v1437, 4
    %v1442 = vrot.slane %v1438, 4
    %v1445 = vadd.f32 %v1425, %v1441
    %v1446 = vadd.f32 %v1426, %v1442
    %v1447 = vrot.slane %v1335, 6
    %v1448 = vrot.slane %v1337, 6
    %1451 = vrot.lane.b32.xlu0 %v1447, 113
    %v1452 = vpop.permute.xlu0 %1451
    %1453 = vrot.lane.b32.xlu0 %v1448, 113
    %v1454 = vpop.permute.xlu0 %1453
    %v1455 = vsel %vm359, %v1452, %v1454
    %v1456 = vsel %vm359, %v1454, %v1452
    %v1457 = vmul.f32 %v1455, %v147
    %v1458 = vmul.f32 %v1456, %v148
    %v1459 = vmul.f32 %v1457, %v129
    %v1460 = vmul.f32 %v1458, %v130
    %v1463 = vrot.slane %v1459, 4
    %v1464 = vrot.slane %v1460, 4
    %v1467 = vadd.f32 %v1445, %v1463
    %v1468 = vadd.f32 %v1446, %v1464
    %v1469 = vrot.slane %v1335, 7
    %v1470 = vrot.slane %v1337, 7
    %1473 = vrot.lane.b32.xlu0 %v1469, 112
    %v1474 = vpop.permute.xlu0 %1473
    %1475 = vrot.lane.b32.xlu0 %v1470, 112
    %v1476 = vpop.permute.xlu0 %1475
    %v1477 = vsel %vm382, %v1474, %v1476
    %v1478 = vsel %vm382, %v1476, %v1474
    %v1479 = vmul.f32 %v1477, %v147
    %v1480 = vmul.f32 %v1478, %v148
    %v1483 = vrot.slane %v1479, 4
    %v1484 = vrot.slane %v1480, 4
    %v1487 = vadd.f32 %v1467, %v1483
    %v1488 = vadd.f32 %v1468, %v1484
    %1489 = vrot.lane.b32.xlu0 %v1341, 111
    %v1490 = vpop.permute.xlu0 %1489
    %1491 = vrot.lane.b32.xlu0 %v1343, 111
    %v1492 = vpop.permute.xlu0 %1491
    %v1493 = vsel %vm399, %v1490, %v1492
    %v1494 = vsel %vm399, %v1492, %v1490
    %v1495 = vmul.f32 %v1493, %v147
    %v1496 = vmul.f32 %v1494, %v148
    %v1497 = vmul.f32 %v1495, %v135
    %v1498 = vmul.f32 %v1496, %v136
    %v1501 = vrot.slane %v1497, 4
    %v1502 = vrot.slane %v1498, 4
    %v1505 = vadd.f32 %v1487, %v1501
    %v1506 = vadd.f32 %v1488, %v1502
    %s1507 = scalar_lea.vmem [#allocation8], 64
    %v1508 = vld [vmem:[%s1507] sm:$0xff]
    %v1509 = vld [vmem:[%s1507 + $0x8] sm:$0xff]
    %v1510 = vld [vmem:[%s1507 + $0x10] sm:$0xff]
    %v1511 = vld [vmem:[%s1507 + $0x18] sm:$0xff]
    %v1512 = vld [vmem:[%s1507 + $0x20] sm:$0xff]
    %v1513 = vld [vmem:[%s1507 + $0x28] sm:$0xff]
    %v1514 = vld [vmem:[%s1507 + $0x30] sm:$0xff]
    %v1515 = vld [vmem:[%s1507 + $0x38] sm:$0xff]
    %1516 = vmatprep.subr.mxu0 %v1509
    %1517 = vmatpush1.msra.mxu0 %v1508
    %1518 = vmatprep.subr.mxu0 %v1511
    %1519 = vmatpush1.msra.mxu0 %v1510
    %1520 = vmatprep.subr.mxu0 %v1513
    %1521 = vmatpush1.msra.mxu0 %v1512
    %1522 = vmatprep.subr.mxu0 %v1515
    %1523 = vmatpush1.msra.mxu0 %v1514
    %1524 = vmatprep.subr.mxu0 0.0
    %1525 = vmatpush1.msra.mxu0 0.0
    %1526 = vmatprep.subr.mxu0 0.0
    %1527 = vmatpush1.msra.mxu0 0.0
    %1528 = vmatprep.subr.mxu0 0.0
    %1529 = vmatpush1.msra.mxu0 0.0
    %1530 = vmatprep.subr.mxu0 0.0
    %1531 = vmatpush1.msra.mxu0 0.0
    %1532 = vmatprep.subr.mxu0 0.0
    %1533 = vmatpush1.msra.mxu0 0.0
    %1534 = vmatprep.subr.mxu0 0.0
    %1535 = vmatpush1.msra.mxu0 0.0
    %1536 = vmatprep.subr.mxu0 0.0
    %1537 = vmatpush1.msra.mxu0 0.0
    %1538 = vmatprep.subr.mxu0 0.0
    %1539 = vmatpush1.msra.mxu0 0.0
    %1540 = vmatprep.subr.mxu0 0.0
    %1541 = vmatpush1.msra.mxu0 0.0
    %1542 = vmatprep.subr.mxu0 0.0
    %1543 = vmatpush1.msra.mxu0 0.0
    %1544 = vmatprep.subr.mxu0 0.0
    %1545 = vmatpush1.msra.mxu0 0.0
    %1546 = vmatprep.subr.mxu0 0.0
    %1547 = vmatpush1.msra.mxu0 0.0
    %1548 = vmatprep.subr.mxu0 0.0
    %1549 = vmatpush1.msra.mxu0 0.0
    %1550 = vmatprep.subr.mxu0 0.0
    %1551 = vmatpush1.msra.mxu0 0.0
    %1552 = vmatprep.subr.mxu0 0.0
    %1553 = vmatpush1.msra.mxu0 0.0
    %1554 = vmatprep.subr.mxu0 0.0
    %1555 = vmatpush1.msra.mxu0 0.0
    %1556 = vmatprep.subr.mxu0 0.0
    %1557 = vmatpush1.msra.mxu0 0.0
    %1558 = vmatprep.subr.mxu0 0.0
    %1559 = vmatpush1.msra.mxu0 0.0
    %1560 = vmatprep.subr.mxu0 0.0
    %1561 = vmatpush1.msra.mxu0 0.0
    %1562 = vmatprep.subr.mxu0 0.0
    %1563 = vmatpush1.msra.mxu0 0.0
    %1564 = vmatprep.subr.mxu0 0.0
    %1565 = vmatpush1.msra.mxu0 0.0
    %1566 = vmatprep.subr.mxu0 0.0
    %1567 = vmatpush1.msra.mxu0 0.0
    %1568 = vmatprep.subr.mxu0 0.0
    %1569 = vmatpush1.msra.mxu0 0.0
    %1570 = vmatprep.subr.mxu0 0.0
    %1571 = vmatpush1.msra.mxu0 0.0
    %1572 = vmatprep.subr.mxu0 0.0
    %1573 = vmatpush1.msra.mxu0 0.0
    %1574 = vmatprep.subr.mxu0 0.0
    %1575 = vmatpush1.msra.mxu0 0.0
    %1576 = vmatprep.subr.mxu0 0.0
    %1577 = vmatpush1.msra.mxu0 0.0
    %1578 = vmatprep.subr.mxu0 0.0
    %1579 = vmatpush1.msra.mxu0 0.0
    %1580 = vmatprep.mubr.f32.mxu0 0.0
    %1581 = vmatmul.mubr.f32.gmra.mrb[0].mxu0 %v1263
    %v1582 = vpop.f32.mrb[0].mxu0
    %v1583 = vadd.f32 0.0, %v1582
    %v1584 = vpop.f32.mrb[0].mxu0
    %v1585 = vadd.f32 0.0, %v1584
    %1586 = vmatprep.mubr.f32.mxu0 0.0
    %1587 = vmatmul.mubr.f32.gmra.mrb[0].mxu0 %v1266
    %v1588 = vpop.f32.mrb[0].mxu0
    %v1589 = vadd.f32 0.0, %v1588
    %v1590 = vpop.f32.mrb[0].mxu0
    %v1591 = vadd.f32 0.0, %v1590
    %1592 = vdwg.mxu0
    %1593 = vrot.lane.b32.xlu0 %v1583, 17
    %v1594 = vpop.permute.xlu0 %1593
    %1595 = vrot.lane.b32.xlu0 %v1585, 17
    %v1596 = vpop.permute.xlu0 %1595
    %v1597 = vsel %vm248, %v1594, %v1596
    %v1598 = vsel %vm248, %v1596, %v1594
    %v1599 = vmul.f32 %v1598, %v141
    %v1600 = vmul.f32 %v1597, %v142
    %v1601 = vmul.f32 %v1599, %v129
    %v1602 = vmul.f32 %v1600, %v130
    %v1605 = vrot.slane %v1601, 4
    %v1606 = vrot.slane %v1602, 4
    %v1609 = vadd.f32 %v1583, %v1605
    %v1610 = vadd.f32 %v1585, %v1606
    %v1613 = vrot.slane %v1583, 1
    %v1614 = vrot.slane %v1585, 1
    %1617 = vrot.lane.b32.xlu0 %v1613, 16
    %v1618 = vpop.permute.xlu0 %1617
    %1619 = vrot.lane.b32.xlu0 %v1614, 16
    %v1620 = vpop.permute.xlu0 %1619
    %v1621 = vsel %vm273, %v1618, %v1620
    %v1622 = vsel %vm273, %v1620, %v1618
    %v1623 = vmul.f32 %v1622, %v141
    %v1624 = vmul.f32 %v1621, %v142
    %v1627 = vrot.slane %v1623, 4
    %v1628 = vrot.slane %v1624, 4
    %v1631 = vadd.f32 %v1609, %v1627
    %v1632 = vadd.f32 %v1610, %v1628
    %v1633 = vrot.slane %v1583, 2
    %v1634 = vrot.slane %v1585, 2
    %1637 = vrot.lane.b32.xlu0 %v1633, 15
    %v1638 = vpop.permute.xlu0 %1637
    %1639 = vrot.lane.b32.xlu0 %v1634, 15
    %v1640 = vpop.permute.xlu0 %1639
    %v1641 = vsel %vm294, %v1638, %v1640
    %v1642 = vsel %vm294, %v1640, %v1638
    %v1643 = vmul.f32 %v1642, %v141
    %v1644 = vmul.f32 %v1641, %v142
    %v1645 = vmul.f32 %v1643, %v135
    %v1646 = vmul.f32 %v1644, %v136
    %v1649 = vrot.slane %v1645, 4
    %v1650 = vrot.slane %v1646, 4
    %v1653 = vadd.f32 %v1631, %v1649
    %v1654 = vadd.f32 %v1632, %v1650
    %v1655 = vrot.slane %v1583, 3
    %v1656 = vrot.slane %v1585, 3
    %1659 = vrot.lane.b32.xlu0 %v1655, 1
    %v1660 = vpop.permute.xlu0 %1659
    %1661 = vrot.lane.b32.xlu0 %v1656, 1
    %v1662 = vpop.permute.xlu0 %1661
    %v1663 = vsel %vm317, %v1660, %v1662
    %v1664 = vsel %vm317, %v1662, %v1660
    %v1665 = vmul.f32 %v1664, %v129
    %v1666 = vmul.f32 %v1663, %v130
    %v1669 = vrot.slane %v1665, 4
    %v1670 = vrot.slane %v1666, 4
    %v1673 = vadd.f32 %v1653, %v1669
    %v1674 = vadd.f32 %v1654, %v1670
    %v1675 = vrot.slane %v1583, 5
    %v1676 = vrot.slane %v1585, 5
    %1679 = vrot.lane.b32.xlu0 %v1675, 127
    %v1680 = vpop.permute.xlu0 %1679
    %1681 = vrot.lane.b32.xlu0 %v1676, 127
    %v1682 = vpop.permute.xlu0 %1681
    %v1683 = vsel %vm338, %v1680, %v1682
    %v1684 = vsel %vm338, %v1682, %v1680
    %v1685 = vmul.f32 %v1683, %v135
    %v1686 = vmul.f32 %v1684, %v136
    %v1689 = vrot.slane %v1685, 4
    %v1690 = vrot.slane %v1686, 4
    %v1693 = vadd.f32 %v1673, %v1689
    %v1694 = vadd.f32 %v1674, %v1690
    %v1695 = vrot.slane %v1583, 6
    %v1696 = vrot.slane %v1585, 6
    %1699 = vrot.lane.b32.xlu0 %v1695, 113
    %v1700 = vpop.permute.xlu0 %1699
    %1701 = vrot.lane.b32.xlu0 %v1696, 113
    %v1702 = vpop.permute.xlu0 %1701
    %v1703 = vsel %vm359, %v1700, %v1702
    %v1704 = vsel %vm359, %v1702, %v1700
    %v1705 = vmul.f32 %v1703, %v147
    %v1706 = vmul.f32 %v1704, %v148
    %v1707 = vmul.f32 %v1705, %v129
    %v1708 = vmul.f32 %v1706, %v130
    %v1711 = vrot.slane %v1707, 4
    %v1712 = vrot.slane %v1708, 4
    %v1715 = vadd.f32 %v1693, %v1711
    %v1716 = vadd.f32 %v1694, %v1712
    %v1717 = vrot.slane %v1583, 7
    %v1718 = vrot.slane %v1585, 7
    %1721 = vrot.lane.b32.xlu0 %v1717, 112
    %v1722 = vpop.permute.xlu0 %1721
    %1723 = vrot.lane.b32.xlu0 %v1718, 112
    %v1724 = vpop.permute.xlu0 %1723
    %v1725 = vsel %vm382, %v1722, %v1724
    %v1726 = vsel %vm382, %v1724, %v1722
    %v1727 = vmul.f32 %v1725, %v147
    %v1728 = vmul.f32 %v1726, %v148
    %v1731 = vrot.slane %v1727, 4
    %v1732 = vrot.slane %v1728, 4
    %v1735 = vadd.f32 %v1715, %v1731
    %v1736 = vadd.f32 %v1716, %v1732
    %1737 = vrot.lane.b32.xlu0 %v1589, 111
    %v1738 = vpop.permute.xlu0 %1737
    %1739 = vrot.lane.b32.xlu0 %v1591, 111
    %v1740 = vpop.permute.xlu0 %1739
    %v1741 = vsel %vm399, %v1738, %v1740
    %v1742 = vsel %vm399, %v1740, %v1738
    %v1743 = vmul.f32 %v1741, %v147
    %v1744 = vmul.f32 %v1742, %v148
    %v1745 = vmul.f32 %v1743, %v135
    %v1746 = vmul.f32 %v1744, %v136
    %v1749 = vrot.slane %v1745, 4
    %v1750 = vrot.slane %v1746, 4
    %v1753 = vadd.f32 %v1735, %v1749
    %v1754 = vadd.f32 %v1736, %v1750
    %v1757 = vrot.slane %v1505, 4
    %v1758 = vrot.slane %v1506, 4
    %v1763 = vrot.slane %v1753, 3
    %v1764 = vrot.slane %v1754, 3
    %v1767 = vsel %vm674, %v1757, %v1763
    %v1768 = vsel %vm674, %v1758, %v1764
    %v1769 = vstv %s1253
    %v1770 = vadd.f32 %v1767, %v1769
    %v1771 = vadd.f32 %v1768, %v1769
    %v1772 = vxor.u32 %v1770, 2147483648
    %v1773 = vxor.u32 %v1771, 2147483648
    %v1774 = vmul.f32 %v1772, 1.442695
    %v1775 = vpow.pop %v1774
    %v1776 = vmul.f32 %v1773, 1.442695
    %v1777 = vpow.pop %v1776
    %v1778 = vadd.f32 %v1775, 1.0
    %v1779 = vadd.f32 %v1777, 1.0
    %v1780 = vrcp.pop %v1778
    %v1781 = vmul.f32 1.0, %v1780
    %v1782 = vrcp.pop %v1779
    %v1783 = vmul.f32 1.0, %v1782
    %v1786 = vcombine.low %v1781, %v1783
    %v1788 = vunpack.c.l.s4 1983009808
    %v1789 = vunpack.c.0.s8 %v1788
    %v1790 = vlaneseq
    %v1791 = vshrl.u32 %v1790, 7
    %v1792 = vsub.s32 %v1789, %v1791
    %v1793 = vrot.slane %v1786, %v1792
    %1795 = vst [vmem:[#allocation15] sm:$0xf] %v1793
    %s1796 = scalar_lea.vmem %s4, 48
    %v1797 = vld [vmem:[%s1796] sm:$0xff]
    %v1798 = vld [vmem:[%s1796 + $0x8] sm:$0x1]
    %s1799 = sld [smem:[#allocation11 + $0x3]]
    %v1800 = vld [vmem:[#allocation9] sm:$0xff]
    %v1801 = vld [vmem:[#allocation9 + $0x8] sm:$0xff]
    %v1802 = vld [vmem:[#allocation9 + $0x10] sm:$0xff]
    %v1803 = vld [vmem:[#allocation9 + $0x18] sm:$0xff]
    %v1804 = vld [vmem:[#allocation9 + $0x20] sm:$0xff]
    %v1805 = vld [vmem:[#allocation9 + $0x28] sm:$0xff]
    %v1806 = vld [vmem:[#allocation9 + $0x30] sm:$0xff]
    %v1807 = vld [vmem:[#allocation9 + $0x38] sm:$0xff]
    %v1809 = vsel %vm160, %v1797, 0
    %v1812 = vsel %vm160, %v1798, 0
    %1814 = vmatprep.subr.mxu0 %v1801
    %1815 = vmatpush1.msra.mxu0 %v1800
    %1816 = vmatprep.subr.mxu0 %v1803
    %1817 = vmatpush1.msra.mxu0 %v1802
    %1818 = vmatprep.subr.mxu0 %v1805
    %1819 = vmatpush1.msra.mxu0 %v1804
    %1820 = vmatprep.subr.mxu0 %v1807
    %1821 = vmatpush1.msra.mxu0 %v1806
    %1822 = vmatprep.subr.mxu0 0.0
    %1823 = vmatpush1.msra.mxu0 0.0
    %1824 = vmatprep.subr.mxu0 0.0
    %1825 = vmatpush1.msra.mxu0 0.0
    %1826 = vmatprep.subr.mxu0 0.0
    %1827 = vmatpush1.msra.mxu0 0.0
    %1828 = vmatprep.subr.mxu0 0.0
    %1829 = vmatpush1.msra.mxu0 0.0
    %1830 = vmatprep.subr.mxu0 0.0
    %1831 = vmatpush1.msra.mxu0 0.0
    %1832 = vmatprep.subr.mxu0 0.0
    %1833 = vmatpush1.msra.mxu0 0.0
    %1834 = vmatprep.subr.mxu0 0.0
    %1835 = vmatpush1.msra.mxu0 0.0
    %1836 = vmatprep.subr.mxu0 0.0
    %1837 = vmatpush1.msra.mxu0 0.0
    %1838 = vmatprep.subr.mxu0 0.0
    %1839 = vmatpush1.msra.mxu0 0.0
    %1840 = vmatprep.subr.mxu0 0.0
    %1841 = vmatpush1.msra.mxu0 0.0
    %1842 = vmatprep.subr.mxu0 0.0
    %1843 = vmatpush1.msra.mxu0 0.0
    %1844 = vmatprep.subr.mxu0 0.0
    %1845 = vmatpush1.msra.mxu0 0.0
    %1846 = vmatprep.subr.mxu0 0.0
    %1847 = vmatpush1.msra.mxu0 0.0
    %1848 = vmatprep.subr.mxu0 0.0
    %1849 = vmatpush1.msra.mxu0 0.0
    %1850 = vmatprep.subr.mxu0 0.0
    %1851 = vmatpush1.msra.mxu0 0.0
    %1852 = vmatprep.subr.mxu0 0.0
    %1853 = vmatpush1.msra.mxu0 0.0
    %1854 = vmatprep.subr.mxu0 0.0
    %1855 = vmatpush1.msra.mxu0 0.0
    %1856 = vmatprep.subr.mxu0 0.0
    %1857 = vmatpush1.msra.mxu0 0.0
    %1858 = vmatprep.subr.mxu0 0.0
    %1859 = vmatpush1.msra.mxu0 0.0
    %1860 = vmatprep.subr.mxu0 0.0
    %1861 = vmatpush1.msra.mxu0 0.0
    %1862 = vmatprep.subr.mxu0 0.0
    %1863 = vmatpush1.msra.mxu0 0.0
    %1864 = vmatprep.subr.mxu0 0.0
    %1865 = vmatpush1.msra.mxu0 0.0
    %1866 = vmatprep.subr.mxu0 0.0
    %1867 = vmatpush1.msra.mxu0 0.0
    %1868 = vmatprep.subr.mxu0 0.0
    %1869 = vmatpush1.msra.mxu0 0.0
    %1870 = vmatprep.subr.mxu0 0.0
    %1871 = vmatpush1.msra.mxu0 0.0
    %1872 = vmatprep.subr.mxu0 0.0
    %1873 = vmatpush1.msra.mxu0 0.0
    %1874 = vmatprep.subr.mxu0 0.0
    %1875 = vmatpush1.msra.mxu0 0.0
    %1876 = vmatprep.subr.mxu0 0.0
    %1877 = vmatpush1.msra.mxu0 0.0
    %1878 = vmatprep.mubr.f32.mxu0 0.0
    %1879 = vmatmul.mubr.f32.gmra.mrb[0].mxu0 %v1809
    %v1880 = vpop.f32.mrb[0].mxu0
    %v1881 = vadd.f32 0.0, %v1880
    %v1882 = vpop.f32.mrb[0].mxu0
    %v1883 = vadd.f32 0.0, %v1882
    %1884 = vmatprep.mubr.f32.mxu0 0.0
    %1885 = vmatmul.mubr.f32.gmra.mrb[0].mxu0 %v1812
    %v1886 = vpop.f32.mrb[0].mxu0
    %v1887 = vadd.f32 0.0, %v1886
    %v1888 = vpop.f32.mrb[0].mxu0
    %v1889 = vadd.f32 0.0, %v1888
    %1890 = vdwg.mxu0
    %1891 = vrot.lane.b32.xlu0 %v1881, 17
    %v1892 = vpop.permute.xlu0 %1891
    %1893 = vrot.lane.b32.xlu0 %v1883, 17
    %v1894 = vpop.permute.xlu0 %1893
    %v1895 = vsel %vm248, %v1892, %v1894
    %v1896 = vsel %vm248, %v1894, %v1892
    %v1897 = vmul.f32 %v1896, %v141
    %v1898 = vmul.f32 %v1895, %v142
    %v1899 = vmul.f32 %v1897, %v129
    %v1900 = vmul.f32 %v1898, %v130
    %v1903 = vrot.slane %v1899, 4
    %v1904 = vrot.slane %v1900, 4
    %v1907 = vadd.f32 %v1881, %v1903
    %v1908 = vadd.f32 %v1883, %v1904
    %v1911 = vrot.slane %v1881, 1
    %v1912 = vrot.slane %v1883, 1
    %1915 = vrot.lane.b32.xlu0 %v1911, 16
    %v1916 = vpop.permute.xlu0 %1915
    %1917 = vrot.lane.b32.xlu0 %v1912, 16
    %v1918 = vpop.permute.xlu0 %1917
    %v1919 = vsel %vm273, %v1916, %v1918
    %v1920 = vsel %vm273, %v1918, %v1916
    %v1921 = vmul.f32 %v1920, %v141
    %v1922 = vmul.f32 %v1919, %v142
    %v1925 = vrot.slane %v1921, 4
    %v1926 = vrot.slane %v1922, 4
    %v1929 = vadd.f32 %v1907, %v1925
    %v1930 = vadd.f32 %v1908, %v1926
    %v1931 = vrot.slane %v1881, 2
    %v1932 = vrot.slane %v1883, 2
    %1935 = vrot.lane.b32.xlu0 %v1931, 15
    %v1936 = vpop.permute.xlu0 %1935
    %1937 = vrot.lane.b32.xlu0 %v1932, 15
    %v1938 = vpop.permute.xlu0 %1937
    %v1939 = vsel %vm294, %v1936, %v1938
    %v1940 = vsel %vm294, %v1938, %v1936
    %v1941 = vmul.f32 %v1940, %v141
    %v1942 = vmul.f32 %v1939, %v142
    %v1943 = vmul.f32 %v1941, %v135
    %v1944 = vmul.f32 %v1942, %v136
    %v1947 = vrot.slane %v1943, 4
    %v1948 = vrot.slane %v1944, 4
    %v1951 = vadd.f32 %v1929, %v1947
    %v1952 = vadd.f32 %v1930, %v1948
    %v1953 = vrot.slane %v1881, 3
    %v1954 = vrot.slane %v1883, 3
    %1957 = vrot.lane.b32.xlu0 %v1953, 1
    %v1958 = vpop.permute.xlu0 %1957
    %1959 = vrot.lane.b32.xlu0 %v1954, 1
    %v1960 = vpop.permute.xlu0 %1959
    %v1961 = vsel %vm317, %v1958, %v1960
    %v1962 = vsel %vm317, %v1960, %v1958
    %v1963 = vmul.f32 %v1962, %v129
    %v1964 = vmul.f32 %v1961, %v130
    %v1967 = vrot.slane %v1963, 4
    %v1968 = vrot.slane %v1964, 4
    %v1971 = vadd.f32 %v1951, %v1967
    %v1972 = vadd.f32 %v1952, %v1968
    %v1973 = vrot.slane %v1881, 5
    %v1974 = vrot.slane %v1883, 5
    %1977 = vrot.lane.b32.xlu0 %v1973, 127
    %v1978 = vpop.permute.xlu0 %1977
    %1979 = vrot.lane.b32.xlu0 %v1974, 127
    %v1980 = vpop.permute.xlu0 %1979
    %v1981 = vsel %vm338, %v1978, %v1980
    %v1982 = vsel %vm338, %v1980, %v1978
    %v1983 = vmul.f32 %v1981, %v135
    %v1984 = vmul.f32 %v1982, %v136
    %v1987 = vrot.slane %v1983, 4
    %v1988 = vrot.slane %v1984, 4
    %v1991 = vadd.f32 %v1971, %v1987
    %v1992 = vadd.f32 %v1972, %v1988
    %v1993 = vrot.slane %v1881, 6
    %v1994 = vrot.slane %v1883, 6
    %1997 = vrot.lane.b32.xlu0 %v1993, 113
    %v1998 = vpop.permute.xlu0 %1997
    %1999 = vrot.lane.b32.xlu0 %v1994, 113
    %v2000 = vpop.permute.xlu0 %1999
    %v2001 = vsel %vm359, %v1998, %v2000
    %v2002 = vsel %vm359, %v2000, %v1998
    %v2003 = vmul.f32 %v2001, %v147
    %v2004 = vmul.f32 %v2002, %v148
    %v2005 = vmul.f32 %v2003, %v129
    %v2006 = vmul.f32 %v2004, %v130
    %v2009 = vrot.slane %v2005, 4
    %v2010 = vrot.slane %v2006, 4
    %v2013 = vadd.f32 %v1991, %v2009
    %v2014 = vadd.f32 %v1992, %v2010
    %v2015 = vrot.slane %v1881, 7
    %v2016 = vrot.slane %v1883, 7
    %2019 = vrot.lane.b32.xlu0 %v2015, 112
    %v2020 = vpop.permute.xlu0 %2019
    %2021 = vrot.lane.b32.xlu0 %v2016, 112
    %v2022 = vpop.permute.xlu0 %2021
    %v2023 = vsel %vm382, %v2020, %v2022
    %v2024 = vsel %vm382, %v2022, %v2020
    %v2025 = vmul.f32 %v2023, %v147
    %v2026 = vmul.f32 %v2024, %v148
    %v2029 = vrot.slane %v2025, 4
    %v2030 = vrot.slane %v2026, 4
    %v2033 = vadd.f32 %v2013, %v2029
    %v2034 = vadd.f32 %v2014, %v2030
    %2035 = vrot.lane.b32.xlu0 %v1887, 111
    %v2036 = vpop.permute.xlu0 %2035
    %2037 = vrot.lane.b32.xlu0 %v1889, 111
    %v2038 = vpop.permute.xlu0 %2037
    %v2039 = vsel %vm399, %v2036, %v2038
    %v2040 = vsel %vm399, %v2038, %v2036
    %v2041 = vmul.f32 %v2039, %v147
    %v2042 = vmul.f32 %v2040, %v148
    %v2043 = vmul.f32 %v2041, %v135
    %v2044 = vmul.f32 %v2042, %v136
    %v2047 = vrot.slane %v2043, 4
    %v2048 = vrot.slane %v2044, 4
    %v2051 = vadd.f32 %v2033, %v2047
    %v2052 = vadd.f32 %v2034, %v2048
    %s2053 = scalar_lea.vmem [#allocation9], 64
    %v2054 = vld [vmem:[%s2053] sm:$0xff]
    %v2055 = vld [vmem:[%s2053 + $0x8] sm:$0xff]
    %v2056 = vld [vmem:[%s2053 + $0x10] sm:$0xff]
    %v2057 = vld [vmem:[%s2053 + $0x18] sm:$0xff]
    %v2058 = vld [vmem:[%s2053 + $0x20] sm:$0xff]
    %v2059 = vld [vmem:[%s2053 + $0x28] sm:$0xff]
    %v2060 = vld [vmem:[%s2053 + $0x30] sm:$0xff]
    %v2061 = vld [vmem:[%s2053 + $0x38] sm:$0xff]
    %2062 = vmatprep.subr.mxu0 %v2055
    %2063 = vmatpush1.msra.mxu0 %v2054
    %2064 = vmatprep.subr.mxu0 %v2057
    %2065 = vmatpush1.msra.mxu0 %v2056
    %2066 = vmatprep.subr.mxu0 %v2059
    %2067 = vmatpush1.msra.mxu0 %v2058
    %2068 = vmatprep.subr.mxu0 %v2061
    %2069 = vmatpush1.msra.mxu0 %v2060
    %2070 = vmatprep.subr.mxu0 0.0
    %2071 = vmatpush1.msra.mxu0 0.0
    %2072 = vmatprep.subr.mxu0 0.0
    %2073 = vmatpush1.msra.mxu0 0.0
    %2074 = vmatprep.subr.mxu0 0.0
    %2075 = vmatpush1.msra.mxu0 0.0
    %2076 = vmatprep.subr.mxu0 0.0
    %2077 = vmatpush1.msra.mxu0 0.0
    %2078 = vmatprep.subr.mxu0 0.0
    %2079 = vmatpush1.msra.mxu0 0.0
    %2080 = vmatprep.subr.mxu0 0.0
    %2081 = vmatpush1.msra.mxu0 0.0
    %2082 = vmatprep.subr.mxu0 0.0
    %2083 = vmatpush1.msra.mxu0 0.0
    %2084 = vmatprep.subr.mxu0 0.0
    %2085 = vmatpush1.msra.mxu0 0.0
    %2086 = vmatprep.subr.mxu0 0.0
    %2087 = vmatpush1.msra.mxu0 0.0
    %2088 = vmatprep.subr.mxu0 0.0
    %2089 = vmatpush1.msra.mxu0 0.0
    %2090 = vmatprep.subr.mxu0 0.0
    %2091 = vmatpush1.msra.mxu0 0.0
    %2092 = vmatprep.subr.mxu0 0.0
    %2093 = vmatpush1.msra.mxu0 0.0
    %2094 = vmatprep.subr.mxu0 0.0
    %2095 = vmatpush1.msra.mxu0 0.0
    %2096 = vmatprep.subr.mxu0 0.0
    %2097 = vmatpush1.msra.mxu0 0.0
    %2098 = vmatprep.subr.mxu0 0.0
    %2099 = vmatpush1.msra.mxu0 0.0
    %2100 = vmatprep.subr.mxu0 0.0
    %2101 = vmatpush1.msra.mxu0 0.0
    %2102 = vmatprep.subr.mxu0 0.0
    %2103 = vmatpush1.msra.mxu0 0.0
    %2104 = vmatprep.subr.mxu0 0.0
    %2105 = vmatpush1.msra.mxu0 0.0
    %2106 = vmatprep.subr.mxu0 0.0
    %2107 = vmatpush1.msra.mxu0 0.0
    %2108 = vmatprep.subr.mxu0 0.0
    %2109 = vmatpush1.msra.mxu0 0.0
    %2110 = vmatprep.subr.mxu0 0.0
    %2111 = vmatpush1.msra.mxu0 0.0
    %2112 = vmatprep.subr.mxu0 0.0
    %2113 = vmatpush1.msra.mxu0 0.0
    %2114 = vmatprep.subr.mxu0 0.0
    %2115 = vmatpush1.msra.mxu0 0.0
    %2116 = vmatprep.subr.mxu0 0.0
    %2117 = vmatpush1.msra.mxu0 0.0
    %2118 = vmatprep.subr.mxu0 0.0
    %2119 = vmatpush1.msra.mxu0 0.0
    %2120 = vmatprep.subr.mxu0 0.0
    %2121 = vmatpush1.msra.mxu0 0.0
    %2122 = vmatprep.subr.mxu0 0.0
    %2123 = vmatpush1.msra.mxu0 0.0
    %2124 = vmatprep.subr.mxu0 0.0
    %2125 = vmatpush1.msra.mxu0 0.0
    %2126 = vmatprep.mubr.f32.mxu0 0.0
    %2127 = vmatmul.mubr.f32.gmra.mrb[0].mxu0 %v1809
    %v2128 = vpop.f32.mrb[0].mxu0
    %v2129 = vadd.f32 0.0, %v2128
    %v2130 = vpop.f32.mrb[0].mxu0
    %v2131 = vadd.f32 0.0, %v2130
    %2132 = vmatprep.mubr.f32.mxu0 0.0
    %2133 = vmatmul.mubr.f32.gmra.mrb[0].mxu0 %v1812
    %v2134 = vpop.f32.mrb[0].mxu0
    %v2135 = vadd.f32 0.0, %v2134
    %v2136 = vpop.f32.mrb[0].mxu0
    %v2137 = vadd.f32 0.0, %v2136
    %2138 = vdwg.mxu0
    %2139 = vrot.lane.b32.xlu0 %v2129, 17
    %v2140 = vpop.permute.xlu0 %2139
    %2141 = vrot.lane.b32.xlu0 %v2131, 17
    %v2142 = vpop.permute.xlu0 %2141
    %v2143 = vsel %vm248, %v2140, %v2142
    %v2144 = vsel %vm248, %v2142, %v2140
    %v2145 = vmul.f32 %v2144, %v141
    %v2146 = vmul.f32 %v2143, %v142
    %v2147 = vmul.f32 %v2145, %v129
    %v2148 = vmul.f32 %v2146, %v130
    %v2151 = vrot.slane %v2147, 4
    %v2152 = vrot.slane %v2148, 4
    %v2155 = vadd.f32 %v2129, %v2151
    %v2156 = vadd.f32 %v2131, %v2152
    %v2159 = vrot.slane %v2129, 1
    %v2160 = vrot.slane %v2131, 1
    %2163 = vrot.lane.b32.xlu0 %v2159, 16
    %v2164 = vpop.permute.xlu0 %2163
    %2165 = vrot.lane.b32.xlu0 %v2160, 16
    %v2166 = vpop.permute.xlu0 %2165
    %v2167 = vsel %vm273, %v2164, %v2166
    %v2168 = vsel %vm273, %v2166, %v2164
    %v2169 = vmul.f32 %v2168, %v141
    %v2170 = vmul.f32 %v2167, %v142
    %v2173 = vrot.slane %v2169, 4
    %v2174 = vrot.slane %v2170, 4
    %v2177 = vadd.f32 %v2155, %v2173
    %v2178 = vadd.f32 %v2156, %v2174
    %v2179 = vrot.slane %v2129, 2
    %v2180 = vrot.slane %v2131, 2
    %2183 = vrot.lane.b32.xlu0 %v2179, 15
    %v2184 = vpop.permute.xlu0 %2183
    %2185 = vrot.lane.b32.xlu0 %v2180, 15
    %v2186 = vpop.permute.xlu0 %2185
    %v2187 = vsel %vm294, %v2184, %v2186
    %v2188 = vsel %vm294, %v2186, %v2184
    %v2189 = vmul.f32 %v2188, %v141
    %v2190 = vmul.f32 %v2187, %v142
    %v2191 = vmul.f32 %v2189, %v135
    %v2192 = vmul.f32 %v2190, %v136
    %v2195 = vrot.slane %v2191, 4
    %v2196 = vrot.slane %v2192, 4
    %v2199 = vadd.f32 %v2177, %v2195
    %v2200 = vadd.f32 %v2178, %v2196
    %v2201 = vrot.slane %v2129, 3
    %v2202 = vrot.slane %v2131, 3
    %2205 = vrot.lane.b32.xlu0 %v2201, 1
    %v2206 = vpop.permute.xlu0 %2205
    %2207 = vrot.lane.b32.xlu0 %v2202, 1
    %v2208 = vpop.permute.xlu0 %2207
    %v2209 = vsel %vm317, %v2206, %v2208
    %v2210 = vsel %vm317, %v2208, %v2206
    %v2211 = vmul.f32 %v2210, %v129
    %v2212 = vmul.f32 %v2209, %v130
    %v2215 = vrot.slane %v2211, 4
    %v2216 = vrot.slane %v2212, 4
    %v2219 = vadd.f32 %v2199, %v2215
    %v2220 = vadd.f32 %v2200, %v2216
    %v2221 = vrot.slane %v2129, 5
    %v2222 = vrot.slane %v2131, 5
    %2225 = vrot.lane.b32.xlu0 %v2221, 127
    %v2226 = vpop.permute.xlu0 %2225
    %2227 = vrot.lane.b32.xlu0 %v2222, 127
    %v2228 = vpop.permute.xlu0 %2227
    %v2229 = vsel %vm338, %v2226, %v2228
    %v2230 = vsel %vm338, %v2228, %v2226
    %v2231 = vmul.f32 %v2229, %v135
    %v2232 = vmul.f32 %v2230, %v136
    %v2235 = vrot.slane %v2231, 4
    %v2236 = vrot.slane %v2232, 4
    %v2239 = vadd.f32 %v2219, %v2235
    %v2240 = vadd.f32 %v2220, %v2236
    %v2241 = vrot.slane %v2129, 6
    %v2242 = vrot.slane %v2131, 6
    %2245 = vrot.lane.b32.xlu0 %v2241, 113
    %v2246 = vpop.permute.xlu0 %2245
    %2247 = vrot.lane.b32.xlu0 %v2242, 113
    %v2248 = vpop.permute.xlu0 %2247
    %v2249 = vsel %vm359, %v2246, %v2248
    %v2250 = vsel %vm359, %v2248, %v2246
    %v2251 = vmul.f32 %v2249, %v147
    %v2252 = vmul.f32 %v2250, %v148
    %v2253 = vmul.f32 %v2251, %v129
    %v2254 = vmul.f32 %v2252, %v130
    %v2257 = vrot.slane %v2253, 4
    %v2258 = vrot.slane %v2254, 4
    %v2261 = vadd.f32 %v2239, %v2257
    %v2262 = vadd.f32 %v2240, %v2258
    %v2263 = vrot.slane %v2129, 7
    %v2264 = vrot.slane %v2131, 7
    %2267 = vrot.lane.b32.xlu0 %v2263, 112
    %v2268 = vpop.permute.xlu0 %2267
    %2269 = vrot.lane.b32.xlu0 %v2264, 112
    %v2270 = vpop.permute.xlu0 %2269
    %v2271 = vsel %vm382, %v2268, %v2270
    %v2272 = vsel %vm382, %v2270, %v2268
    %v2273 = vmul.f32 %v2271, %v147
    %v2274 = vmul.f32 %v2272, %v148
    %v2277 = vrot.slane %v2273, 4
    %v2278 = vrot.slane %v2274, 4
    %v2281 = vadd.f32 %v2261, %v2277
    %v2282 = vadd.f32 %v2262, %v2278
    %2283 = vrot.lane.b32.xlu0 %v2135, 111
    %v2284 = vpop.permute.xlu0 %2283
    %2285 = vrot.lane.b32.xlu0 %v2137, 111
    %v2286 = vpop.permute.xlu0 %2285
    %v2287 = vsel %vm399, %v2284, %v2286
    %v2288 = vsel %vm399, %v2286, %v2284
    %v2289 = vmul.f32 %v2287, %v147
    %v2290 = vmul.f32 %v2288, %v148
    %v2291 = vmul.f32 %v2289, %v135
    %v2292 = vmul.f32 %v2290, %v136
    %v2295 = vrot.slane %v2291, 4
    %v2296 = vrot.slane %v2292, 4
    %v2299 = vadd.f32 %v2281, %v2295
    %v2300 = vadd.f32 %v2282, %v2296
    %v2303 = vrot.slane %v2051, 4
    %v2304 = vrot.slane %v2052, 4
    %v2309 = vrot.slane %v2299, 3
    %v2310 = vrot.slane %v2300, 3
    %v2313 = vsel %vm674, %v2303, %v2309
    %v2314 = vsel %vm674, %v2304, %v2310
    %v2315 = vstv %s1799
    %v2316 = vadd.f32 %v2313, %v2315
    %v2317 = vadd.f32 %v2314, %v2315
    %v2318 = vxor.u32 %v2316, 2147483648
    %v2319 = vxor.u32 %v2317, 2147483648
    %v2320 = vmul.f32 %v2318, 1.442695
    %v2321 = vpow.pop %v2320
    %v2322 = vmul.f32 %v2319, 1.442695
    %v2323 = vpow.pop %v2322
    %v2324 = vadd.f32 %v2321, 1.0
    %v2325 = vadd.f32 %v2323, 1.0
    %v2326 = vrcp.pop %v2324
    %v2327 = vmul.f32 1.0, %v2326
    %v2328 = vrcp.pop %v2325
    %v2329 = vmul.f32 1.0, %v2328
    %v2332 = vcombine.low %v2327, %v2329
    %v2334 = vunpack.c.l.s4 1983009808
    %v2335 = vunpack.c.0.s8 %v2334
    %v2336 = vlaneseq
    %v2337 = vshrl.u32 %v2336, 7
    %v2338 = vsub.s32 %v2335, %v2337
    %v2339 = vrot.slane %v2332, %v2338
    %2341 = vst [vmem:[#allocation16] sm:$0xf] %v2339
    // Predicated region
    $region46: #{tpu_custom_call.1} parent=1 // pred_check
      _
    $region47: #{tpu_custom_call.1} parent=1 // pred_check_branch
      %2343 = sbr.rel (0) target = $region49
    $region48: #{tpu_custom_call.1} parent=1 // pred_region
      %s2345 = ssub.s32 64, 64
      %2346 = vsyncadd [#allocation4], %s2345
      %s2348 = sshll.u32 [#allocation12], 4
      %s2349 = int_to_ptr.vmem [resolvable:$true] %s2348
      %2351 = dma.vmem_to_hbm [thread:$0]  %s2349, 64, %s6, [#allocation4]
    $region49: #{tpu_custom_call.1} parent=1 // pred_fallthru
      _
    // Predicated region
    $region50: #{tpu_custom_call.1} parent=1 // pred_check
      _
    $region51: #{tpu_custom_call.1} parent=1 // pred_check_branch
      %2353 = sbr.rel (0) target = $region53
    $region52: #{tpu_custom_call.1} parent=1 // pred_region
      %s2355 = ssub.s32 64, 64
      %2356 = vsyncadd [#allocation14], %s2355
      %s2358 = sshll.u32 [#allocation13], 4
      %s2359 = int_to_ptr.vmem [resolvable:$true] %s2358
      %2361 = dma.vmem_to_hbm [thread:$0]  %s2359, 64, %s7, [#allocation14]
    $region53: #{tpu_custom_call.1} parent=1 // pred_fallthru
      _
    // Predicated region
    $region54: #{tpu_custom_call.1} parent=1 // pred_check
      _
    $region55: #{tpu_custom_call.1} parent=1 // pred_check_branch
      %2363 = sbr.rel (0) target = $region57
    $region56: #{tpu_custom_call.1} parent=1 // pred_region
      %s2365 = ssub.s32 64, 64
      %2366 = vsyncadd [#allocation14], %s2365
      %s2368 = sshll.u32 [#allocation15], 4
      %s2369 = int_to_ptr.vmem [resolvable:$true] %s2368
      %2371 = dma.vmem_to_hbm [thread:$0]  %s2369, 64, %s8, [#allocation14]
    $region57: #{tpu_custom_call.1} parent=1 // pred_fallthru
      _
    // Predicated region
    $region58: #{tpu_custom_call.1} parent=1 // pred_check
      _
    $region59: #{tpu_custom_call.1} parent=1 // pred_check_branch
      %2373 = sbr.rel (0) target = $region61
    $region60: #{tpu_custom_call.1} parent=1 // pred_region
      %s2375 = ssub.s32 64, 64
      %2376 = vsyncadd [#allocation17], %s2375
      %s2378 = sshll.u32 [#allocation16], 4
      %s2379 = int_to_ptr.vmem [resolvable:$true] %s2378
      %2381 = dma.vmem_to_hbm [thread:$0]  %s2379, 64, %s9, [#allocation17]
    $region61: #{tpu_custom_call.1} parent=1 // pred_fallthru
      _
    // Predicated region
    $region62: #{tpu_custom_call.1} parent=1 // pred_check
      _
    $region63: #{tpu_custom_call.1} parent=1 // pred_check_branch
      %2383 = sbr.rel (0) target = $region65
    $region64: #{tpu_custom_call.1} parent=1 // pred_region
      %2384 = dma.done [#allocation4], 64
    $region65: #{tpu_custom_call.1} parent=1 // pred_fallthru
      _
    // Predicated region
    $region66: #{tpu_custom_call.1} parent=1 // pred_check
      _
    $region67: #{tpu_custom_call.1} parent=1 // pred_check_branch
      %2386 = sbr.rel (0) target = $region69
    $region68: #{tpu_custom_call.1} parent=1 // pred_region
      %2387 = dma.done [#allocation14], 64
    $region69: #{tpu_custom_call.1} parent=1 // pred_fallthru
      _
    // Predicated region
    $region70: #{tpu_custom_call.1} parent=1 // pred_check
      _
    $region71: #{tpu_custom_call.1} parent=1 // pred_check_branch
      %2389 = sbr.rel (0) target = $region73
    $region72: #{tpu_custom_call.1} parent=1 // pred_region
      %2390 = dma.done [#allocation14], 64
    $region73: #{tpu_custom_call.1} parent=1 // pred_fallthru
      _
    // Predicated region
    $region74: #{tpu_custom_call.1} parent=1 // pred_check
      _
    $region75: #{tpu_custom_call.1} parent=1 // pred_check_branch
      %2392 = sbr.rel (0) target = $region77
    $region76: #{tpu_custom_call.1} parent=1 // pred_region
      %2393 = dma.done [#allocation17], 64
    $region77: #{tpu_custom_call.1} parent=1 // pred_fallthru
      _
    %2394 = vsyncpa [#allocation3], 1
    %2395 = vsyncpa [#allocation7], 1
    %2396 = vsyncpa [#allocation10], 1
    %2397 = vsyncpa [#allocation4], 1
    %2398 = vsyncpa [#allocation14], 1
    %2399 = vsyncpa [#allocation17], 1
    %2400 = vsyncpa [#allocation5], 1

</llo_original>
